<compile_context>
chip_gen: v6e
topology: v6e:2x2x1
jax: 0.10.0
libtpu: 0.0.40
codegen_flags: <defaults>
</compile_context>

<pallas_src>
import jax
import jax.numpy as jnp
from jax.experimental import pallas as pl
from jax.experimental.pallas import tpu as pltpu


# ----------------------------------------------------------------------------
# Kernel 1: fused TemplatePairEmbedderMultimer forward
# ----------------------------------------------------------------------------
def _pair_embedder_kernel(dg_ref, sc_ref, q_ref, arow_ref, acol_ref,
                          wd_ref, ws_ref, wq_ref, g_ref, b_ref, bias_ref,
                          o_ref):
    # dg_ref : (tm, c_dgram)   flattened pair rows of the distogram
    # sc_ref : (tm, 5)         [pb_mask_2d, x, y, z, backbone_mask_2d] per pair
    # q_ref  : (tm, c_in)      query embedding (z) rows
    # arow   : (ti, c_out)     aatype_linear_2(aatype) for the row residues
    # acol   : (n,  c_out)     aatype_linear_1(aatype) for all column residues
    # wd/ws/wq : weights; g/b : LayerNorm affine; bias : sum of all biases
    tm = dg_ref.shape[0]
    ti = arow_ref.shape[0]
    n = acol_ref.shape[0]
    c_out = o_ref.shape[-1]

    sc = sc_ref[...].astype(jnp.float32)                 # (tm, 5)
    pb2d = sc[:, 0:1]                                    # (tm, 1)

    # masked distogram -> dgram_linear
    dg = dg_ref[...].astype(jnp.float32) * pb2d
    acc = jnp.dot(dg, wd_ref[...], preferred_element_type=jnp.float32)

    # the five 1-input linears (pb mask, x, y, z, backbone mask) as one K=5 GEMM
    acc = acc + jnp.dot(sc, ws_ref[...], preferred_element_type=jnp.float32)

    # LayerNorm(query_embedding) -> query_embedding_linear
    q = q_ref[...].astype(jnp.float32)
    mu = jnp.mean(q, axis=-1, keepdims=True)
    qc = q - mu
    var = jnp.mean(qc * qc, axis=-1, keepdims=True)
    qn = qc * jax.lax.rsqrt(var + 1e-5)
    qn = qn * g_ref[...] + b_ref[...]
    acc = acc + jnp.dot(qn, wq_ref[...], preferred_element_type=jnp.float32)

    # aatype row + column broadcasts (per-residue embeddings computed upstream)
    aat = arow_ref[...][:, None, :] + acol_ref[...][None, :, :]   # (ti, n, c_out)
    acc = acc + aat.reshape(tm, c_out)

    # all nine biases folded into one add
    acc = acc + bias_ref[...]
    o_ref[...] = acc.astype(o_ref.dtype)


def template_pair_embedder_multimer(template_dgram, aatype_one_hot,
                                    query_embedding, pseudo_beta_mask,
                                    backbone_mask, multichain_mask_2d,
                                    unit_vector, params, *,
                                    tile_rows_target=2048):
    """Fused forward of TemplatePairEmbedderMultimer.

    template_dgram      : [N, N, c_dgram]
    aatype_one_hot      : [N, c_aatype]
    query_embedding (z) : [N, N, c_in]
    pseudo_beta_mask    : [N]
    backbone_mask       : [N]
    multichain_mask_2d  : [N, N]
    unit_vector         : tuple of three [N, N] arrays (x, y, z)
    returns             : [N, N, c_out]
    """
    f32 = jnp.float32
    hp = jax.lax.Precision.HIGHEST
    n = template_dgram.shape[0]
    c_dgram = template_dgram.shape[-1]
    c_in = query_embedding.shape[-1]
    c_out = params['dgram_w'].shape[-1]
    out_dtype = query_embedding.dtype

    # Cheap O(N^2) mask/feature prep (tiny next to the N^2*(c_dgram+c_in) stream).
    pbm = pseudo_beta_mask.astype(f32)
    bbm = backbone_mask.astype(f32)
    mc = multichain_mask_2d.astype(f32)
    pb2d = pbm[:, None] * pbm[None, :] * mc
    bb2d = bbm[:, None] * bbm[None, :] * mc
    ux, uy, uz = unit_vector
    scal = jnp.stack([pb2d,
                      ux.astype(f32) * bb2d,
                      uy.astype(f32) * bb2d,
                      uz.astype(f32) * bb2d,
                      bb2d], axis=-1)                              # [N, N, 5]

    # Tiny per-residue aatype GEMMs (N x 22 x c_out); broadcast inside the kernel.
    arow = jnp.dot(aatype_one_hot.astype(f32), params['aatype_2_w'].astype(f32),
                   precision=hp)                                   # varies with i
    acol = jnp.dot(aatype_one_hot.astype(f32), params['aatype_1_w'].astype(f32),
                   precision=hp)                                   # varies with j

    ws = jnp.stack([params['pb_w'][0], params['x_w'][0], params['y_w'][0],
                    params['z_w'][0], params['bb_w'][0]], axis=0).astype(f32)
    bias_sum = (params['dgram_b'] + params['pb_b'] + params['aatype_1_b'] +
                params['aatype_2_b'] + params['x_b'] + params['y_b'] +
                params['z_b'] + params['bb_b'] + params['q_b']
                ).astype(f32).reshape(1, c_out)

    # Flatten pair dims (free, row-major) -- no jnp.pad, no output slicing.
    m = n * n
    dg2 = template_dgram.reshape(m, c_dgram).astype(f32)
    q2 = query_embedding.reshape(m, c_in).astype(f32)
    sc2 = scal.reshape(m, 5)

    # Row tile = ti residues -> tm = ti * n flattened rows per grid step.
    ti = max(1, tile_rows_target // n)
    if ti < n:
        ti = ((ti + 7) // 8) * 8        # keep sublane (8) alignment for sub-blocks
    ti = min(ti, n)
    tm = ti * n
    grid = pl.cdiv(n, ti)
    # NOTE: for very large N_res on v5e (16 MiB scoped-VMEM default) raise
    # pltpu.CompilerParams(vmem_limit_bytes=...) or lower tile_rows_target.

    cost = pl.CostEstimate(
        flops=2 * m * (c_dgram + 5 + c_in) * c_out,
        transcendentals=m,
        bytes_accessed=4 * m * (c_dgram + 5 + c_in + c_out),
    )

    out2d = pl.pallas_call(
        _pair_embedder_kernel,
        out_shape=jax.ShapeDtypeStruct((m, c_out), out_dtype),
        grid_spec=pltpu.PrefetchScalarGridSpec(
            num_scalar_prefetch=0,
            grid=(grid,),
            in_specs=[
                pl.BlockSpec((tm, c_dgram), lambda i: (i, 0)),
                pl.BlockSpec((tm, 5), lambda i: (i, 0)),
                pl.BlockSpec((tm, c_in), lambda i: (i, 0)),
                pl.BlockSpec((ti, c_out), lambda i: (i, 0)),
                pl.BlockSpec((n, c_out), lambda i: (0, 0)),
                pl.BlockSpec((c_dgram, c_out), lambda i: (0, 0)),
                pl.BlockSpec((5, c_out), lambda i: (0, 0)),
                pl.BlockSpec((c_in, c_out), lambda i: (0, 0)),
                pl.BlockSpec((1, c_in), lambda i: (0, 0)),
                pl.BlockSpec((1, c_in), lambda i: (0, 0)),
                pl.BlockSpec((1, c_out), lambda i: (0, 0)),
            ],
            out_specs=pl.BlockSpec((tm, c_out), lambda i: (i, 0)),
        ),
        compiler_params=pltpu.CompilerParams(
            dimension_semantics=("parallel",)),
        cost_estimate=cost,
    )(dg2, sc2, q2, arow, acol,
      params['dgram_w'].astype(f32), ws, params['q_w'].astype(f32),
      params['ln_g'].reshape(1, c_in).astype(f32),
      params['ln_b'].reshape(1, c_in).astype(f32),
      bias_sum)

    return out2d.reshape(n, n, c_out)


# ----------------------------------------------------------------------------
# Kernel 2: fused TemplateSingleEmbedderMultimer (linear -> relu -> linear)
# ----------------------------------------------------------------------------
def _single_embedder_kernel(x_ref, w1_ref, b1_ref, w2_ref, b2_ref, o_ref):
    h = jnp.dot(x_ref[...].astype(jnp.float32), w1_ref[...].astype(jnp.float32),
                preferred_element_type=jnp.float32)
    h = jnp.maximum(h + b1_ref[...].astype(jnp.float32), 0.0)
    o = jnp.dot(h, w2_ref[...].astype(jnp.float32),
                preferred_element_type=jnp.float32)
    o = o + b2_ref[...].astype(jnp.float32)
    o_ref[...] = o.astype(o_ref.dtype)


def template_single_embedder_multimer(template_features, params, *, tile_m=1024):
    """template_features: [*, c_in] (aatype one-hot ++ sin/cos chi ++ chi mask)."""
    c_in = template_features.shape[-1]
    c_out = params['w1'].shape[-1]
    lead = template_features.shape[:-1]
    m = 1
    for d in lead:
        m *= d
    x2d = template_features.reshape(m, c_in)

    tm = min(tile_m, m)
    if tm < m:
        tm = max(8, (tm // 8) * 8)
    grid = pl.cdiv(m, tm)

    out2d = pl.pallas_call(
        _single_embedder_kernel,
        out_shape=jax.ShapeDtypeStruct((m, c_out), template_features.dtype),
        grid_spec=pltpu.PrefetchScalarGridSpec(
            num_scalar_prefetch=0,
            grid=(grid,),
            in_specs=[
                pl.BlockSpec((tm, c_in), lambda i: (i, 0)),
                pl.BlockSpec((c_in, c_out), lambda i: (0, 0)),
                pl.BlockSpec((1, c_out), lambda i: (0, 0)),
                pl.BlockSpec((c_out, c_out), lambda i: (0, 0)),
                pl.BlockSpec((1, c_out), lambda i: (0, 0)),
            ],
            out_specs=pl.BlockSpec((tm, c_out), lambda i: (i, 0)),
        ),
        compiler_params=pltpu.CompilerParams(
            dimension_semantics=("parallel",)),
    )(x2d, params['w1'], params['b1'].reshape(1, c_out),
      params['w2'], params['b2'].reshape(1, c_out))

    return out2d.reshape(*lead, c_out)


# ----------------------------------------------------------------------------
# Parameter init + pure-JAX references
# ----------------------------------------------------------------------------
def _he_linear(key, c_in, c_out):
    # Weights stored as [c_in, c_out] (transposed vs. PyTorch).  Real init='relu'
    # uses zero bias; random bias here so the bias path is actually exercised.
    kw, kb = jax.random.split(key)
    w = jax.random.normal(kw, (c_in, c_out), jnp.float32) * (2.0 / c_in) ** 0.5
    b = 0.1 * jax.random.normal(kb, (c_out,), jnp.float32)
    return w, b


def init_pair_embedder_params(key, c_dgram, c_aatype, c_in, c_out):
    ks = jax.random.split(key, 11)
    p = {}
    p['dgram_w'], p['dgram_b'] = _he_linear(ks[0], c_dgram, c_out)
    p['aatype_1_w'], p['aatype_1_b'] = _he_linear(ks[1], c_aatype, c_out)
    p['aatype_2_w'], p['aatype_2_b'] = _he_linear(ks[2], c_aatype, c_out)
    p['q_w'], p['q_b'] = _he_linear(ks[3], c_in, c_out)
    p['pb_w'], p['pb_b'] = _he_linear(ks[4], 1, c_out)
    p['x_w'], p['x_b'] = _he_linear(ks[5], 1, c_out)
    p['y_w'], p['y_b'] = _he_linear(ks[6], 1, c_out)
    p['z_w'], p['z_b'] = _he_linear(ks[7], 1, c_out)
    p['bb_w'], p['bb_b'] = _he_linear(ks[8], 1, c_out)
    p['ln_g'] = 1.0 + 0.1 * jax.random.normal(ks[9], (c_in,), jnp.float32)
    p['ln_b'] = 0.1 * jax.random.normal(ks[10], (c_in,), jnp.float32)
    return p


def init_single_embedder_params(key, c_in, c_out):
    k1, k2 = jax.random.split(key)
    w1, b1 = _he_linear(k1, c_in, c_out)
    w2, b2 = _he_linear(k2, c_out, c_out)
    return {'w1': w1, 'b1': b1, 'w2': w2, 'b2': b2}


def _pair_embedder_reference(template_dgram, aatype_one_hot, query_embedding,
                             pseudo_beta_mask, backbone_mask, multichain_mask_2d,
                             unit_vector, p):
    hp = jax.lax.Precision.HIGHEST
    pbm = pseudo_beta_mask
    pb2d = pbm[:, None] * pbm[None, :] * multichain_mask_2d
    dg = template_dgram * pb2d[..., None]
    act = jnp.dot(dg, p['dgram_w'], precision=hp) + p['dgram_b']
    act = act + (pb2d[..., None] * p['pb_w'][0] + p['pb_b'])
    act = act + (jnp.dot(aatype_one_hot, p['aatype_1_w'], precision=hp)
                 + p['aatype_1_b'])[None, :, :]
    act = act + (jnp.dot(aatype_one_hot, p['aatype_2_w'], precision=hp)
                 + p['aatype_2_b'])[:, None, :]
    bbm = backbone_mask
    bb2d = bbm[:, None] * bbm[None, :] * multichain_mask_2d
    ux, uy, uz = [c * bb2d for c in unit_vector]
    act = act + (ux[..., None] * p['x_w'][0] + p['x_b'])
    act = act + (uy[..., None] * p['y_w'][0] + p['y_b'])
    act = act + (uz[..., None] * p['z_w'][0] + p['z_b'])
    act = act + (bb2d[..., None] * p['bb_w'][0] + p['bb_b'])
    q = query_embedding
    mu = jnp.mean(q, axis=-1, keepdims=True)
    var = jnp.mean((q - mu) ** 2, axis=-1, keepdims=True)
    qn = (q - mu) / jnp.sqrt(var + 1e-5) * p['ln_g'] + p['ln_b']
    act = act + jnp.dot(qn, p['q_w'], precision=hp) + p['q_b']
    return act


def _single_embedder_reference(feats, p):
    hp = jax.lax.Precision.HIGHEST
    h = jnp.maximum(jnp.dot(feats, p['w1'], precision=hp) + p['b1'], 0.0)
    return jnp.dot(h, p['w2'], precision=hp) + p['b2']


# ----------------------------------------------------------------------------
# Demo / correctness check
# ----------------------------------------------------------------------------
if __name__ == "__main__":
    key = jax.random.PRNGKey(0)
    ks = jax.random.split(key, 16)

    n_res, c_dgram, c_aatype, c_z, c_t = 16, 39, 22, 64, 64

    template_dgram = jax.random.normal(ks[0], (n_res, n_res, c_dgram), jnp.float32)
    aatype = jax.random.randint(ks[1], (n_res,), 0, c_aatype)
    aatype_one_hot = jax.nn.one_hot(aatype, c_aatype, dtype=jnp.float32)
    query_embedding = jax.random.normal(ks[2], (n_res, n_res, c_z), jnp.float32)
    pseudo_beta_mask = (jax.random.uniform(ks[3], (n_res,)) > 0.2).astype(jnp.float32)
    backbone_mask = (jax.random.uniform(ks[4], (n_res,)) > 0.2).astype(jnp.float32)
    multichain_mask_2d = (jax.random.uniform(ks[5], (n_res, n_res)) > 0.3).astype(jnp.float32)
    unit_vector = tuple(jax.random.normal(k, (n_res, n_res), jnp.float32)
                        for k in ks[6:9])

    pair_params = init_pair_embedder_params(ks[9], c_dgram, c_aatype, c_z, c_t)

    # Small shapes -> 8-residue row tiles, 2 grid steps (exercises the grid).
    pair_act = template_pair_embedder_multimer(
        template_dgram, aatype_one_hot, query_embedding, pseudo_beta_mask,
        backbone_mask, multichain_mask_2d, unit_vector, pair_params,
        tile_rows_target=128)
    pair_act = jax.block_until_ready(pair_act)

    pair_ref = _pair_embedder_reference(
        template_dgram, aatype_one_hot, query_embedding, pseudo_beta_mask,
        backbone_mask, multichain_mask_2d, unit_vector, pair_params)
    assert pair_act.shape == (n_res, n_res, c_t), pair_act.shape
    assert jnp.allclose(pair_act, pair_ref, atol=3e-3, rtol=3e-3), \
        float(jnp.max(jnp.abs(pair_act - pair_ref)))

    # Template single embedder (chi-angle features pre-built upstream).
    n_templ = 2
    c_single_in = c_aatype + 12   # aatype one-hot + sin/cos chi (4+4) + chi mask (4)
    template_features = jax.random.normal(
        ks[10], (n_templ, n_res, c_single_in), jnp.float32)
    single_params = init_single_embedder_params(ks[11], c_single_in, c_t)

    single_act = template_single_embedder_multimer(template_features, single_params)
    single_act = jax.block_until_ready(single_act)

    single_ref = _single_embedder_reference(template_features, single_params)
    assert single_act.shape == (n_templ, n_res, c_t), single_act.shape
    assert jnp.allclose(single_act, single_ref, atol=3e-3, rtol=3e-3), \
        float(jnp.max(jnp.abs(single_act - single_ref)))

    print("KERNEL_OK")
</pallas_src>

<mosaic_0001>
module attributes {stable_mosaic.version = 11 : i64} {
  func.func @_pair_embedder_kernel(%arg0: i32, %arg1: memref<128x39xf32, #tpu.memory_space<vmem>>, %arg2: memref<128x5xf32, #tpu.memory_space<vmem>>, %arg3: memref<128x64xf32, #tpu.memory_space<vmem>>, %arg4: memref<8x64xf32, #tpu.memory_space<vmem>>, %arg5: memref<16x64xf32, #tpu.memory_space<vmem>>, %arg6: memref<39x64xf32, #tpu.memory_space<vmem>>, %arg7: memref<5x64xf32, #tpu.memory_space<vmem>>, %arg8: memref<64x64xf32, #tpu.memory_space<vmem>>, %arg9: memref<1x64xf32, #tpu.memory_space<vmem>>, %arg10: memref<1x64xf32, #tpu.memory_space<vmem>>, %arg11: memref<1x64xf32, #tpu.memory_space<vmem>>, %arg12: memref<128x64xf32, #tpu.memory_space<vmem>>) attributes {dimension_semantics = [#tpu.dimension_semantics<parallel>], iteration_bounds = array<i64: 2>, scalar_prefetch = 0 : i64, scratch_operands = 0 : i64, tpu.core_type = #tpu.core_type<tc>, window_params = [{transform_indices = @transform_0, window_bounds = array<i64: 128, 39>}, {transform_indices = @transform_1, window_bounds = array<i64: 128, 5>}, {transform_indices = @transform_2, window_bounds = array<i64: 128, 64>}, {transform_indices = @transform_3, window_bounds = array<i64: 8, 64>}, {pipeline_mode = #tpu.pipeline_mode<synchronous>, transform_indices = @transform_4, window_bounds = array<i64: 16, 64>}, {pipeline_mode = #tpu.pipeline_mode<synchronous>, transform_indices = @transform_5, window_bounds = array<i64: 39, 64>}, {pipeline_mode = #tpu.pipeline_mode<synchronous>, transform_indices = @transform_6, window_bounds = array<i64: 5, 64>}, {pipeline_mode = #tpu.pipeline_mode<synchronous>, transform_indices = @transform_7, window_bounds = array<i64: 64, 64>}, {pipeline_mode = #tpu.pipeline_mode<synchronous>, transform_indices = @transform_8, window_bounds = array<i64: 1, 64>}, {pipeline_mode = #tpu.pipeline_mode<synchronous>, transform_indices = @transform_9, window_bounds = array<i64: 1, 64>}, {pipeline_mode = #tpu.pipeline_mode<synchronous>, transform_indices = @transform_10, window_bounds = array<i64: 1, 64>}, {transform_indices = @transform_11, window_bounds = array<i64: 128, 64>}]} {
    %c0 = arith.constant 0 : index
    %c0_0 = arith.constant 0 : index
    %0 = vector.load %arg2[%c0, %c0_0] : memref<128x5xf32, #tpu.memory_space<vmem>>, vector<128x5xf32>
    %1 = vector.extract_strided_slice %0 {offsets = [0, 0], sizes = [128, 1], strides = [1, 1]} : vector<128x5xf32> to vector<128x1xf32>
    %c0_1 = arith.constant 0 : index
    %c0_2 = arith.constant 0 : index
    %2 = vector.load %arg1[%c0_1, %c0_2] : memref<128x39xf32, #tpu.memory_space<vmem>>, vector<128x39xf32>
    %3 = vector.broadcast %1 : vector<128x1xf32> to vector<128x39xf32>
    %4 = arith.mulf %2, %3 : vector<128x39xf32>
    %c0_3 = arith.constant 0 : index
    %c0_4 = arith.constant 0 : index
    %5 = vector.load %arg6[%c0_3, %c0_4] : memref<39x64xf32, #tpu.memory_space<vmem>>, vector<39x64xf32>
    %cst = arith.constant dense<0.000000e+00> : vector<128x64xf32>
    %6 = tpu.matmul %4, %5, %cst {dimension_numbers = #tpu.dot_dimension_numbers<[1], [0], [0], [1], [0, 0, 1, 1], [], []>} : vector<128x39xf32>, vector<39x64xf32>, vector<128x64xf32> -> vector<128x64xf32>
    %c0_5 = arith.constant 0 : index
    %c0_6 = arith.constant 0 : index
    %7 = vector.load %arg7[%c0_5, %c0_6] : memref<5x64xf32, #tpu.memory_space<vmem>>, vector<5x64xf32>
    %cst_7 = arith.constant dense<0.000000e+00> : vector<128x64xf32>
    %8 = tpu.matmul %0, %7, %cst_7 {dimension_numbers = #tpu.dot_dimension_numbers<[1], [0], [0], [1], [0, 0, 1, 1], [], []>} : vector<128x5xf32>, vector<5x64xf32>, vector<128x64xf32> -> vector<128x64xf32>
    %9 = arith.addf %6, %8 : vector<128x64xf32>
    %c0_8 = arith.constant 0 : index
    %c0_9 = arith.constant 0 : index
    %10 = vector.load %arg3[%c0_8, %c0_9] : memref<128x64xf32, #tpu.memory_space<vmem>>, vector<128x64xf32>
    %cst_10 = arith.constant dense<0.000000e+00> : vector<128xf32>
    %11 = vector.multi_reduction <add>, %10, %cst_10 [1] : vector<128x64xf32> to vector<128xf32>
    %12 = vector.shape_cast %11 : vector<128xf32> to vector<128x1xf32>
    %cst_11 = arith.constant 6.400000e+01 : f32
    %13 = vector.broadcast %cst_11 : f32 to vector<128x1xf32>
    %14 = arith.divf %12, %13 : vector<128x1xf32>
    %15 = vector.broadcast %14 : vector<128x1xf32> to vector<128x64xf32>
    %16 = arith.subf %10, %15 : vector<128x64xf32>
    %17 = arith.mulf %16, %16 : vector<128x64xf32>
    %cst_12 = arith.constant dense<0.000000e+00> : vector<128xf32>
    %18 = vector.multi_reduction <add>, %17, %cst_12 [1] : vector<128x64xf32> to vector<128xf32>
    %19 = vector.shape_cast %18 : vector<128xf32> to vector<128x1xf32>
    %cst_13 = arith.constant 6.400000e+01 : f32
    %20 = vector.broadcast %cst_13 : f32 to vector<128x1xf32>
    %21 = arith.divf %19, %20 : vector<128x1xf32>
    %cst_14 = arith.constant 9.99999974E-6 : f32
    %22 = vector.broadcast %cst_14 : f32 to vector<128x1xf32>
    %23 = arith.addf %21, %22 : vector<128x1xf32>
    %24 = math.rsqrt %23 : vector<128x1xf32>
    %25 = vector.broadcast %24 : vector<128x1xf32> to vector<128x64xf32>
    %26 = arith.mulf %16, %25 : vector<128x64xf32>
    %c0_15 = arith.constant 0 : index
    %c0_16 = arith.constant 0 : index
    %27 = vector.load %arg9[%c0_15, %c0_16] : memref<1x64xf32, #tpu.memory_space<vmem>>, vector<1x64xf32>
    %28 = vector.broadcast %27 : vector<1x64xf32> to vector<128x64xf32>
    %29 = arith.mulf %26, %28 : vector<128x64xf32>
    %c0_17 = arith.constant 0 : index
    %c0_18 = arith.constant 0 : index
    %30 = vector.load %arg10[%c0_17, %c0_18] : memref<1x64xf32, #tpu.memory_space<vmem>>, vector<1x64xf32>
    %31 = vector.broadcast %30 : vector<1x64xf32> to vector<128x64xf32>
    %32 = arith.addf %29, %31 : vector<128x64xf32>
    %c0_19 = arith.constant 0 : index
    %c0_20 = arith.constant 0 : index
    %33 = vector.load %arg8[%c0_19, %c0_20] : memref<64x64xf32, #tpu.memory_space<vmem>>, vector<64x64xf32>
    %cst_21 = arith.constant dense<0.000000e+00> : vector<128x64xf32>
    %34 = tpu.matmul %32, %33, %cst_21 {dimension_numbers = #tpu.dot_dimension_numbers<[1], [0], [0], [1], [0, 0, 1, 1], [], []>} : vector<128x64xf32>, vector<64x64xf32>, vector<128x64xf32> -> vector<128x64xf32>
    %35 = arith.addf %9, %34 : vector<128x64xf32>
    %c0_22 = arith.constant 0 : index
    %c0_23 = arith.constant 0 : index
    %36 = vector.load %arg4[%c0_22, %c0_23] : memref<8x64xf32, #tpu.memory_space<vmem>>, vector<8x64xf32>
    %37 = vector.shape_cast %36 : vector<8x64xf32> to vector<8x1x64xf32>
    %c0_24 = arith.constant 0 : index
    %c0_25 = arith.constant 0 : index
    %38 = vector.load %arg5[%c0_24, %c0_25] : memref<16x64xf32, #tpu.memory_space<vmem>>, vector<16x64xf32>
    %39 = vector.shape_cast %38 : vector<16x64xf32> to vector<1x16x64xf32>
    %40 = vector.broadcast %37 : vector<8x1x64xf32> to vector<8x16x64xf32>
    %41 = vector.broadcast %39 : vector<1x16x64xf32> to vector<8x16x64xf32>
    %42 = arith.addf %40, %41 : vector<8x16x64xf32>
    %43 = vector.shape_cast %42 : vector<8x16x64xf32> to vector<128x64xf32>
    %44 = arith.addf %35, %43 : vector<128x64xf32>
    %c0_26 = arith.constant 0 : index
    %c0_27 = arith.constant 0 : index
    %45 = vector.load %arg11[%c0_26, %c0_27] : memref<1x64xf32, #tpu.memory_space<vmem>>, vector<1x64xf32>
    %46 = vector.broadcast %45 : vector<1x64xf32> to vector<128x64xf32>
    %47 = arith.addf %44, %46 : vector<128x64xf32>
    %c0_28 = arith.constant 0 : index
    %c0_29 = arith.constant 0 : index
    %48 = vector.load %arg12[%c0_28, %c0_29] : memref<128x64xf32, #tpu.memory_space<vmem>>, vector<128x64xf32>
    tpu.vector_store %arg12[%c0_28, %c0_29], %47 {strides = array<i32>} : memref<128x64xf32, #tpu.memory_space<vmem>>, vector<128x64xf32>,
    return
  }
  func.func @transform_0(%arg0: i32) -> (i32, i32) {
    %c0_i32 = arith.constant 0 : i32
    %c0_i32_0 = arith.constant 0 : i32
    return %arg0, %c0_i32 : i32, i32
  }
  func.func @transform_1(%arg0: i32) -> (i32, i32) {
    %c0_i32 = arith.constant 0 : i32
    %c0_i32_0 = arith.constant 0 : i32
    return %arg0, %c0_i32 : i32, i32
  }
  func.func @transform_2(%arg0: i32) -> (i32, i32) {
    %c0_i32 = arith.constant 0 : i32
    %c0_i32_0 = arith.constant 0 : i32
    return %arg0, %c0_i32 : i32, i32
  }
  func.func @transform_3(%arg0: i32) -> (i32, i32) {
    %c0_i32 = arith.constant 0 : i32
    %c0_i32_0 = arith.constant 0 : i32
    return %arg0, %c0_i32 : i32, i32
  }
  func.func @transform_4(%arg0: i32) -> (i32, i32) {
    %c0_i32 = arith.constant 0 : i32
    %c0_i32_0 = arith.constant 0 : i32
    %c0_i32_1 = arith.constant 0 : i32
    return %c0_i32, %c0_i32_0 : i32, i32
  }
  func.func @transform_5(%arg0: i32) -> (i32, i32) {
    %c0_i32 = arith.constant 0 : i32
    %c0_i32_0 = arith.constant 0 : i32
    %c0_i32_1 = arith.constant 0 : i32
    return %c0_i32, %c0_i32_0 : i32, i32
  }
  func.func @transform_6(%arg0: i32) -> (i32, i32) {
    %c0_i32 = arith.constant 0 : i32
    %c0_i32_0 = arith.constant 0 : i32
    %c0_i32_1 = arith.constant 0 : i32
    return %c0_i32, %c0_i32_0 : i32, i32
  }
  func.func @transform_7(%arg0: i32) -> (i32, i32) {
    %c0_i32 = arith.constant 0 : i32
    %c0_i32_0 = arith.constant 0 : i32
    %c0_i32_1 = arith.constant 0 : i32
    return %c0_i32, %c0_i32_0 : i32, i32
  }
  func.func @transform_8(%arg0: i32) -> (i32, i32) {
    %c0_i32 = arith.constant 0 : i32
    %c0_i32_0 = arith.constant 0 : i32
    %c0_i32_1 = arith.constant 0 : i32
    return %c0_i32, %c0_i32_0 : i32, i32
  }
  func.func @transform_9(%arg0: i32) -> (i32, i32) {
    %c0_i32 = arith.constant 0 : i32
    %c0_i32_0 = arith.constant 0 : i32
    %c0_i32_1 = arith.constant 0 : i32
    return %c0_i32, %c0_i32_0 : i32, i32
  }
  func.func @transform_10(%arg0: i32) -> (i32, i32) {
    %c0_i32 = arith.constant 0 : i32
    %c0_i32_0 = arith.constant 0 : i32
    %c0_i32_1 = arith.constant 0 : i32
    return %c0_i32, %c0_i32_0 : i32, i32
  }
  func.func @transform_11(%arg0: i32) -> (i32, i32) {
    %c0_i32 = arith.constant 0 : i32
    %c0_i32_0 = arith.constant 0 : i32
    return %arg0, %c0_i32 : i32, i32
  }
}

</mosaic_0001>

<llo_original>
// kernel: tpu_custom_call.1
$region0: #{tpu_custom_call.1}
  #allocation0 [shape = 'u32[]', space=smem, size = 0x4, offset = 0x4, fixed_abs, tag = 'smem constant byte address 0x4 - core index']
  #allocation1 [shape = 'u32[144,128]{1,0:T(1,128)}', space=vmem, size = 0x12000, scoped, tag = 'internal scratch']
  %s0 = inlined_call_operand.vmem [shape: f32[256,39], index: 0, kind: input, shape index: {}]
  %s1 = inlined_call_operand.vmem [shape: f32[256,5], index: 1, kind: input, shape index: {}]
  %s2 = inlined_call_operand.vmem [shape: f32[256,64], index: 2, kind: input, shape index: {}]
  %s3 = inlined_call_operand.vmem [shape: f32[16,64], index: 3, kind: input, shape index: {}]
  %s4 = inlined_call_operand.vmem [shape: f32[16,64], index: 4, kind: input, shape index: {}]
  %s5 = inlined_call_operand.vmem [shape: f32[39,64], index: 5, kind: input, shape index: {}]
  %s6 = inlined_call_operand.vmem [shape: f32[5,64], index: 6, kind: input, shape index: {}]
  %s7 = inlined_call_operand.vmem [shape: f32[64,64], index: 7, kind: input, shape index: {}]
  %s8 = inlined_call_operand.vmem [shape: f32[1,64], index: 8, kind: input, shape index: {}]
  %s9 = inlined_call_operand.vmem [shape: f32[1,64], index: 9, kind: input, shape index: {}]
  %s10 = inlined_call_operand.vmem [shape: f32[1,64], index: 10, kind: input, shape index: {}]
  %s11 = inlined_call_operand.vmem [shape: f32[256,64], index: 11, kind: output, shape index: {}]
  %s12 = sld [smem:[#allocation0]]
  $region77: #{tpu_custom_call.1} parent=0
    _
  %s14 = ssub.s32 1, %s12
  %s15 = scalar_select 0, %s14, %s12
  loop: start=0, step=1, limit=4
  $region2: #{tpu_custom_call.1} parent=0 // loop_pre_header
    _
  $region3: #{tpu_custom_call.1} parent=0 // loop_header
    %s17 = sphi 0, %s21
    %p18 = scmp.ge.s32.totalorder %s17, 4
    %s27 = sphi 0, %s29
    %s30 = sphi 0, %s27
    %s31 = sphi 0, %s30
    %s47 = sphi 0, %s31
    %s53 = sphi 0, %s55
    %s56 = sphi 0, %s53
    %s57 = sphi 0, %s56
    %s73 = sphi 0, %s57
    %s79 = sphi 0, %s81
    %s82 = sphi 0, %s79
    %s83 = sphi 0, %s82
    %s99 = sphi 0, %s83
    %s105 = sphi 0, %s107
    %s108 = sphi 0, %s105
    %s109 = sphi 0, %s108
    %s125 = sphi 0, %s109
    %s129 = sphi 0, %s129
    %s131 = sphi 0, %s129
    %s132 = sphi 0, %s131
    %s146 = sphi 0, %s132
    %s150 = sphi 0, %s150
    %s152 = sphi 0, %s150
    %s153 = sphi 0, %s152
    %s167 = sphi 0, %s153
    %s171 = sphi 0, %s171
    %s173 = sphi 0, %s171
    %s174 = sphi 0, %s173
    %s188 = sphi 0, %s174
    %s192 = sphi 0, %s192
    %s194 = sphi 0, %s192
    %s195 = sphi 0, %s194
    %s209 = sphi 0, %s195
    %s213 = sphi 0, %s213
    %s215 = sphi 0, %s213
    %s216 = sphi 0, %s215
    %s230 = sphi 0, %s216
    %s234 = sphi 0, %s234
    %s236 = sphi 0, %s234
    %s237 = sphi 0, %s236
    %s251 = sphi 0, %s237
    %s255 = sphi 0, %s255
    %s257 = sphi 0, %s255
    %s258 = sphi 0, %s257
    %s272 = sphi 0, %s258
    %s278 = sphi 0, %s280
    %s281 = sphi 0, %s278
    %s282 = sphi 0, %s281
    %s298 = sphi 0, %s282
  $region4: #{tpu_custom_call.1} parent=0 // loop_header_branch
    %20 = sbr.rel (%p18) target = $region8
  $region5: #{tpu_custom_call.1} parent=0 // loop_body
    %s22 = ssub.s32 %s17, 1
    %s23 = ssub.s32 %s17, 2
    %s24 = sadd.s32 %s17, 1
    %s25 = ssub.s32 %s17, %s24
    %p26 = scmp.eq.s32.totalorder %s25, 0
    %s28 = sadd.s32 %s27, 1
    %s29 = scalar_select %p26, %s27, %s28
    %p32 = pneg %p26
    %p33 = scmp.eq.s32.totalorder %s17, 1
    %p34 = por %p32, %p33
    %p35 = scmp.ne.s32.totalorder %s27, %s30
    %p36 = scmp.eq.s32.totalorder %s17, 0
    %p37 = por %p35, %p36
    %p38 = scmp.ne.s32.totalorder %s27, %s30
    %p39 = scmp.eq.s32.totalorder %s22, 1
    %p40 = por %p38, %p39
    %p41 = scmp.ne.s32.totalorder %s30, %s31
    %p42 = scmp.eq.s32.totalorder %s22, 0
    %p43 = por %p41, %p42
    %p44 = scmp.ne.s32.totalorder %s30, %s31
    %p45 = scmp.eq.s32.totalorder %s23, 1
    %p46 = por %p44, %p45
    %p48 = scmp.ne.s32.totalorder %s31, %s47
    %p49 = scmp.eq.s32.totalorder %s23, 0
    %p50 = por %p48, %p49
    %s51 = ssub.s32 %s17, %s24
    %p52 = scmp.eq.s32.totalorder %s51, 0
    %s54 = sadd.s32 %s53, 1
    %s55 = scalar_select %p52, %s53, %s54
    %p58 = pneg %p52
    %p59 = scmp.eq.s32.totalorder %s17, 1
    %p60 = por %p58, %p59
    %p61 = scmp.ne.s32.totalorder %s53, %s56
    %p62 = scmp.eq.s32.totalorder %s17, 0
    %p63 = por %p61, %p62
    %p64 = scmp.ne.s32.totalorder %s53, %s56
    %p65 = scmp.eq.s32.totalorder %s22, 1
    %p66 = por %p64, %p65
    %p67 = scmp.ne.s32.totalorder %s56, %s57
    %p68 = scmp.eq.s32.totalorder %s22, 0
    %p69 = por %p67, %p68
    %p70 = scmp.ne.s32.totalorder %s56, %s57
    %p71 = scmp.eq.s32.totalorder %s23, 1
    %p72 = por %p70, %p71
    %p74 = scmp.ne.s32.totalorder %s57, %s73
    %p75 = scmp.eq.s32.totalorder %s23, 0
    %p76 = por %p74, %p75
    %s77 = ssub.s32 %s17, %s24
    %p78 = scmp.eq.s32.totalorder %s77, 0
    %s80 = sadd.s32 %s79, 1
    %s81 = scalar_select %p78, %s79, %s80
    %p84 = pneg %p78
    %p85 = scmp.eq.s32.totalorder %s17, 1
    %p86 = por %p84, %p85
    %p87 = scmp.ne.s32.totalorder %s79, %s82
    %p88 = scmp.eq.s32.totalorder %s17, 0
    %p89 = por %p87, %p88
    %p90 = scmp.ne.s32.totalorder %s79, %s82
    %p91 = scmp.eq.s32.totalorder %s22, 1
    %p92 = por %p90, %p91
    %p93 = scmp.ne.s32.totalorder %s82, %s83
    %p94 = scmp.eq.s32.totalorder %s22, 0
    %p95 = por %p93, %p94
    %p96 = scmp.ne.s32.totalorder %s82, %s83
    %p97 = scmp.eq.s32.totalorder %s23, 1
    %p98 = por %p96, %p97
    %p100 = scmp.ne.s32.totalorder %s83, %s99
    %p101 = scmp.eq.s32.totalorder %s23, 0
    %p102 = por %p100, %p101
    %s103 = ssub.s32 %s17, %s24
    %p104 = scmp.eq.s32.totalorder %s103, 0
    %s106 = sadd.s32 %s105, 1
    %s107 = scalar_select %p104, %s105, %s106
    %p110 = pneg %p104
    %p111 = scmp.eq.s32.totalorder %s17, 1
    %p112 = por %p110, %p111
    %p113 = scmp.ne.s32.totalorder %s105, %s108
    %p114 = scmp.eq.s32.totalorder %s17, 0
    %p115 = por %p113, %p114
    %p116 = scmp.ne.s32.totalorder %s105, %s108
    %p117 = scmp.eq.s32.totalorder %s22, 1
    %p118 = por %p116, %p117
    %p119 = scmp.ne.s32.totalorder %s108, %s109
    %p120 = scmp.eq.s32.totalorder %s22, 0
    %p121 = por %p119, %p120
    %p122 = scmp.ne.s32.totalorder %s108, %s109
    %p123 = scmp.eq.s32.totalorder %s23, 1
    %p124 = por %p122, %p123
    %p126 = scmp.ne.s32.totalorder %s109, %s125
    %p127 = scmp.eq.s32.totalorder %s23, 0
    %p128 = por %p126, %p127
    %s130 = sadd.s32 %s129, 1
    %p133 = scmp.eq.s32.totalorder %s17, 1
    %p134 = scmp.ne.s32.totalorder %s129, %s131
    %p135 = scmp.eq.s32.totalorder %s17, 0
    %p136 = por %p134, %p135
    %p137 = scmp.ne.s32.totalorder %s129, %s131
    %p138 = scmp.eq.s32.totalorder %s22, 1
    %p139 = por %p137, %p138
    %p140 = scmp.ne.s32.totalorder %s131, %s132
    %p141 = scmp.eq.s32.totalorder %s22, 0
    %p142 = por %p140, %p141
    %p143 = scmp.ne.s32.totalorder %s131, %s132
    %p144 = scmp.eq.s32.totalorder %s23, 1
    %p145 = por %p143, %p144
    %p147 = scmp.ne.s32.totalorder %s132, %s146
    %p148 = scmp.eq.s32.totalorder %s23, 0
    %p149 = por %p147, %p148
    %s151 = sadd.s32 %s150, 1
    %p154 = scmp.eq.s32.totalorder %s17, 1
    %p155 = scmp.ne.s32.totalorder %s150, %s152
    %p156 = scmp.eq.s32.totalorder %s17, 0
    %p157 = por %p155, %p156
    %p158 = scmp.ne.s32.totalorder %s150, %s152
    %p159 = scmp.eq.s32.totalorder %s22, 1
    %p160 = por %p158, %p159
    %p161 = scmp.ne.s32.totalorder %s152, %s153
    %p162 = scmp.eq.s32.totalorder %s22, 0
    %p163 = por %p161, %p162
    %p164 = scmp.ne.s32.totalorder %s152, %s153
    %p165 = scmp.eq.s32.totalorder %s23, 1
    %p166 = por %p164, %p165
    %p168 = scmp.ne.s32.totalorder %s153, %s167
    %p169 = scmp.eq.s32.totalorder %s23, 0
    %p170 = por %p168, %p169
    %s172 = sadd.s32 %s171, 1
    %p175 = scmp.eq.s32.totalorder %s17, 1
    %p176 = scmp.ne.s32.totalorder %s171, %s173
    %p177 = scmp.eq.s32.totalorder %s17, 0
    %p178 = por %p176, %p177
    %p179 = scmp.ne.s32.totalorder %s171, %s173
    %p180 = scmp.eq.s32.totalorder %s22, 1
    %p181 = por %p179, %p180
    %p182 = scmp.ne.s32.totalorder %s173, %s174
    %p183 = scmp.eq.s32.totalorder %s22, 0
    %p184 = por %p182, %p183
    %p185 = scmp.ne.s32.totalorder %s173, %s174
    %p186 = scmp.eq.s32.totalorder %s23, 1
    %p187 = por %p185, %p186
    %p189 = scmp.ne.s32.totalorder %s174, %s188
    %p190 = scmp.eq.s32.totalorder %s23, 0
    %p191 = por %p189, %p190
    %s193 = sadd.s32 %s192, 1
    %p196 = scmp.eq.s32.totalorder %s17, 1
    %p197 = scmp.ne.s32.totalorder %s192, %s194
    %p198 = scmp.eq.s32.totalorder %s17, 0
    %p199 = por %p197, %p198
    %p200 = scmp.ne.s32.totalorder %s192, %s194
    %p201 = scmp.eq.s32.totalorder %s22, 1
    %p202 = por %p200, %p201
    %p203 = scmp.ne.s32.totalorder %s194, %s195
    %p204 = scmp.eq.s32.totalorder %s22, 0
    %p205 = por %p203, %p204
    %p206 = scmp.ne.s32.totalorder %s194, %s195
    %p207 = scmp.eq.s32.totalorder %s23, 1
    %p208 = por %p206, %p207
    %p210 = scmp.ne.s32.totalorder %s195, %s209
    %p211 = scmp.eq.s32.totalorder %s23, 0
    %p212 = por %p210, %p211
    %s214 = sadd.s32 %s213, 1
    %p217 = scmp.eq.s32.totalorder %s17, 1
    %p218 = scmp.ne.s32.totalorder %s213, %s215
    %p219 = scmp.eq.s32.totalorder %s17, 0
    %p220 = por %p218, %p219
    %p221 = scmp.ne.s32.totalorder %s213, %s215
    %p222 = scmp.eq.s32.totalorder %s22, 1
    %p223 = por %p221, %p222
    %p224 = scmp.ne.s32.totalorder %s215, %s216
    %p225 = scmp.eq.s32.totalorder %s22, 0
    %p226 = por %p224, %p225
    %p227 = scmp.ne.s32.totalorder %s215, %s216
    %p228 = scmp.eq.s32.totalorder %s23, 1
    %p229 = por %p227, %p228
    %p231 = scmp.ne.s32.totalorder %s216, %s230
    %p232 = scmp.eq.s32.totalorder %s23, 0
    %p233 = por %p231, %p232
    %s235 = sadd.s32 %s234, 1
    %p238 = scmp.eq.s32.totalorder %s17, 1
    %p239 = scmp.ne.s32.totalorder %s234, %s236
    %p240 = scmp.eq.s32.totalorder %s17, 0
    %p241 = por %p239, %p240
    %p242 = scmp.ne.s32.totalorder %s234, %s236
    %p243 = scmp.eq.s32.totalorder %s22, 1
    %p244 = por %p242, %p243
    %p245 = scmp.ne.s32.totalorder %s236, %s237
    %p246 = scmp.eq.s32.totalorder %s22, 0
    %p247 = por %p245, %p246
    %p248 = scmp.ne.s32.totalorder %s236, %s237
    %p249 = scmp.eq.s32.totalorder %s23, 1
    %p250 = por %p248, %p249
    %p252 = scmp.ne.s32.totalorder %s237, %s251
    %p253 = scmp.eq.s32.totalorder %s23, 0
    %p254 = por %p252, %p253
    %s256 = sadd.s32 %s255, 1
    %p259 = scmp.eq.s32.totalorder %s17, 1
    %p260 = scmp.ne.s32.totalorder %s255, %s257
    %p261 = scmp.eq.s32.totalorder %s17, 0
    %p262 = por %p260, %p261
    %p263 = scmp.ne.s32.totalorder %s255, %s257
    %p264 = scmp.eq.s32.totalorder %s22, 1
    %p265 = por %p263, %p264
    %p266 = scmp.ne.s32.totalorder %s257, %s258
    %p267 = scmp.eq.s32.totalorder %s22, 0
    %p268 = por %p266, %p267
    %p269 = scmp.ne.s32.totalorder %s257, %s258
    %p270 = scmp.eq.s32.totalorder %s23, 1
    %p271 = por %p269, %p270
    %p273 = scmp.ne.s32.totalorder %s258, %s272
    %p274 = scmp.eq.s32.totalorder %s23, 0
    %p275 = por %p273, %p274
    %s276 = ssub.s32 %s17, %s24
    %p277 = scmp.eq.s32.totalorder %s276, 0
    %s279 = sadd.s32 %s278, 1
    %s280 = scalar_select %p277, %s278, %s279
    %p283 = pneg %p277
    %p284 = scmp.eq.s32.totalorder %s17, 1
    %p285 = por %p283, %p284
    %p286 = scmp.ne.s32.totalorder %s278, %s281
    %p287 = scmp.eq.s32.totalorder %s17, 0
    %p288 = por %p286, %p287
    %p289 = scmp.ne.s32.totalorder %s278, %s281
    %p290 = scmp.eq.s32.totalorder %s22, 1
    %p291 = por %p289, %p290
    %p292 = scmp.ne.s32.totalorder %s281, %s282
    %p293 = scmp.eq.s32.totalorder %s22, 0
    %p294 = por %p292, %p293
    %p295 = scmp.ne.s32.totalorder %s281, %s282
    %p296 = scmp.eq.s32.totalorder %s23, 1
    %p297 = por %p295, %p296
    %p299 = scmp.ne.s32.totalorder %s282, %s298
    %p300 = scmp.eq.s32.totalorder %s23, 0
    %p301 = por %p299, %p300
    %p302 = scmp.le.s32.totalorder 1, %s17
    %p303 = scmp.lt.s32.totalorder %s17, 3
    %p304 = pnand %p302, %p303
    %p305 = pneg %p304
    // Predicated region
    $region9: #{tpu_custom_call.1} parent=5 // pred_check
      _
    $region10: #{tpu_custom_call.1} parent=5 // pred_check_branch
      %307 = sbr.rel (%p304) target = $region12
    $region11: #{tpu_custom_call.1} parent=5 // pred_region
      %s308 = ssub.s32 %s17, 1
      // Predicated region
      $region13: #{tpu_custom_call.1} parent=11 // pred_check
        %p309 = pneg %p142
      $region14: #{tpu_custom_call.1} parent=11 // pred_check_branch
        %311 = sbr.rel (%p309) target = $region16
      $region15: #{tpu_custom_call.1} parent=11 // pred_region
        _
      $region16: #{tpu_custom_call.1} parent=11 // pred_fallthru
        _
      // Predicated region
      $region17: #{tpu_custom_call.1} parent=11 // pred_check
        %p312 = pneg %p163
      $region18: #{tpu_custom_call.1} parent=11 // pred_check_branch
        %314 = sbr.rel (%p312) target = $region20
      $region19: #{tpu_custom_call.1} parent=11 // pred_region
        _
      $region20: #{tpu_custom_call.1} parent=11 // pred_fallthru
        _
      // Predicated region
      $region21: #{tpu_custom_call.1} parent=11 // pred_check
        %p315 = pneg %p184
      $region22: #{tpu_custom_call.1} parent=11 // pred_check_branch
        %317 = sbr.rel (%p315) target = $region24
      $region23: #{tpu_custom_call.1} parent=11 // pred_region
        _
      $region24: #{tpu_custom_call.1} parent=11 // pred_fallthru
        _
      // Predicated region
      $region25: #{tpu_custom_call.1} parent=11 // pred_check
        %p318 = pneg %p205
      $region26: #{tpu_custom_call.1} parent=11 // pred_check_branch
        %320 = sbr.rel (%p318) target = $region28
      $region27: #{tpu_custom_call.1} parent=11 // pred_region
        _
      $region28: #{tpu_custom_call.1} parent=11 // pred_fallthru
        _
      // Predicated region
      $region29: #{tpu_custom_call.1} parent=11 // pred_check
        %p321 = pneg %p226
      $region30: #{tpu_custom_call.1} parent=11 // pred_check_branch
        %323 = sbr.rel (%p321) target = $region32
      $region31: #{tpu_custom_call.1} parent=11 // pred_region
        _
      $region32: #{tpu_custom_call.1} parent=11 // pred_fallthru
        _
      // Predicated region
      $region33: #{tpu_custom_call.1} parent=11 // pred_check
        %p324 = pneg %p247
      $region34: #{tpu_custom_call.1} parent=11 // pred_check_branch
        %326 = sbr.rel (%p324) target = $region36
      $region35: #{tpu_custom_call.1} parent=11 // pred_region
        _
      $region36: #{tpu_custom_call.1} parent=11 // pred_fallthru
        _
      // Predicated region
      $region37: #{tpu_custom_call.1} parent=11 // pred_check
        %p327 = pneg %p268
      $region38: #{tpu_custom_call.1} parent=11 // pred_check_branch
        %329 = sbr.rel (%p327) target = $region40
      $region39: #{tpu_custom_call.1} parent=11 // pred_region
        _
      $region40: #{tpu_custom_call.1} parent=11 // pred_fallthru
        _
    $region12: #{tpu_custom_call.1} parent=5 // pred_fallthru
      _
    %p330 = scmp.lt.s32.totalorder %s17, 2
    // Predicated region
    $region41: #{tpu_custom_call.1} parent=5 // pred_check
      %p331 = pneg %p330
    $region42: #{tpu_custom_call.1} parent=5 // pred_check_branch
      %333 = sbr.rel (%p331) target = $region44
    $region43: #{tpu_custom_call.1} parent=5 // pred_region
      // Predicated region
      $region45: #{tpu_custom_call.1} parent=43 // pred_check
        %p334 = pneg %p37
      $region46: #{tpu_custom_call.1} parent=43 // pred_check_branch
        %336 = sbr.rel (%p334) target = $region48
      $region47: #{tpu_custom_call.1} parent=43 // pred_region
        %s337 = smul.u32 16, %s17
        %p338 = scmp.lt.s32.totalorder %s337, 31
        %s339 = scalar_select %p338, %s337, 31
        %s340 = smul.addr %s339, 8
        %s341 = scalar_lea.vmem %s0, %s340
        %s342 = smul.u32 16, %s17
      $region48: #{tpu_custom_call.1} parent=43 // pred_fallthru
        _
      // Predicated region
      $region49: #{tpu_custom_call.1} parent=43 // pred_check
        %p343 = pneg %p63
      $region50: #{tpu_custom_call.1} parent=43 // pred_check_branch
        %345 = sbr.rel (%p343) target = $region52
      $region51: #{tpu_custom_call.1} parent=43 // pred_region
        %s346 = smul.u32 16, %s17
        %p347 = scmp.lt.s32.totalorder %s346, 31
        %s348 = scalar_select %p347, %s346, 31
        %s349 = smul.addr %s348, 8
        %s350 = scalar_lea.vmem %s1, %s349
        %s351 = smul.u32 16, %s17
      $region52: #{tpu_custom_call.1} parent=43 // pred_fallthru
        _
      // Predicated region
      $region53: #{tpu_custom_call.1} parent=43 // pred_check
        %p352 = pneg %p89
      $region54: #{tpu_custom_call.1} parent=43 // pred_check_branch
        %354 = sbr.rel (%p352) target = $region56
      $region55: #{tpu_custom_call.1} parent=43 // pred_region
        %s355 = smul.u32 16, %s17
        %p356 = scmp.lt.s32.totalorder %s355, 31
        %s357 = scalar_select %p356, %s355, 31
        %s358 = smul.addr %s357, 8
        %s359 = scalar_lea.vmem %s2, %s358
        %s360 = smul.u32 16, %s17
      $region56: #{tpu_custom_call.1} parent=43 // pred_fallthru
        _
      // Predicated region
      $region57: #{tpu_custom_call.1} parent=43 // pred_check
        %p361 = pneg %p115
      $region58: #{tpu_custom_call.1} parent=43 // pred_check_branch
        %363 = sbr.rel (%p361) target = $region60
      $region59: #{tpu_custom_call.1} parent=43 // pred_region
        %p364 = scmp.lt.s32.totalorder %s17, 1
        %s365 = scalar_select %p364, %s17, 1
        %s366 = smul.addr %s365, 8
        %s367 = scalar_lea.vmem %s3, %s366
      $region60: #{tpu_custom_call.1} parent=43 // pred_fallthru
        _
    $region44: #{tpu_custom_call.1} parent=5 // pred_fallthru
      _
    %p368 = scmp.le.s32.totalorder 1, %s17
    %p369 = scmp.lt.s32.totalorder %s17, 3
    %p370 = pnand %p368, %p369
    %p371 = pneg %p370
    // Predicated region
    $region61: #{tpu_custom_call.1} parent=5 // pred_check
      _
    $region62: #{tpu_custom_call.1} parent=5 // pred_check_branch
      %373 = sbr.rel (%p370) target = $region64
    $region63: #{tpu_custom_call.1} parent=5 // pred_region
      %s374 = ssub.s32 %s17, 1
      %s375 = smul.u32 16, %s22
      %p376 = scmp.lt.s32.totalorder %s375, 31
      %s377 = scalar_select %p376, %s375, 31
      %s378 = smul.addr %s377, 8
      %s379 = scalar_lea.vmem %s0, %s378
      %p380 = pneg %p43
      %p381 = pneg %p40
      %s382 = smul.u32 16, %s22
      %p383 = scmp.lt.s32.totalorder %s382, 31
      %s384 = scalar_select %p383, %s382, 31
      %s385 = smul.addr %s384, 8
      %s386 = scalar_lea.vmem %s1, %s385
      %p387 = pneg %p69
      %p388 = pneg %p66
      %s389 = smul.u32 16, %s22
      %p390 = scmp.lt.s32.totalorder %s389, 31
      %s391 = scalar_select %p390, %s389, 31
      %s392 = smul.addr %s391, 8
      %s393 = scalar_lea.vmem %s2, %s392
      %p394 = pneg %p95
      %p395 = pneg %p92
      %p396 = scmp.lt.s32.totalorder %s22, 1
      %s397 = scalar_select %p396, %s22, 1
      %s398 = smul.addr %s397, 8
      %s399 = scalar_lea.vmem %s3, %s398
      %p400 = pneg %p121
      %p401 = pneg %p118
      %p402 = pneg %p142
      %p403 = pneg %p139
      %p404 = pneg %p163
      %p405 = pneg %p160
      %p406 = pneg %p184
      %p407 = pneg %p181
      %p408 = pneg %p205
      %p409 = pneg %p202
      %p410 = pneg %p226
      %p411 = pneg %p223
      %p412 = pneg %p247
      %p413 = pneg %p244
      %p414 = pneg %p268
      %p415 = pneg %p265
      %p416 = pneg %p294
      %p417 = pneg %p291
      %s418 = smul.u32 16, %s22
      %p419 = scmp.lt.s32.totalorder %s418, 31
      %s420 = scalar_select %p419, %s418, 31
      %s421 = smul.addr %s420, 8
      %s422 = scalar_lea.vmem %s11, %s421
      %s423 = smul.u32 16, %s22
      %p424 = scmp.lt.s32.totalorder %s423, 31
      %s425 = scalar_select %p424, %s423, 31
      %s426 = smul.addr %s425, 8
      %s427 = scalar_lea.vmem %s0, %s426
      %s428 = smul.u32 16, %s22
      %s429 = smul.u32 16, %s22
      %p430 = scmp.lt.s32.totalorder %s429, 31
      %s431 = scalar_select %p430, %s429, 31
      %s432 = smul.addr %s431, 8
      %s433 = scalar_lea.vmem %s1, %s432
      %s434 = smul.u32 16, %s22
      %s435 = smul.u32 16, %s22
      %p436 = scmp.lt.s32.totalorder %s435, 31
      %s437 = scalar_select %p436, %s435, 31
      %s438 = smul.addr %s437, 8
      %s439 = scalar_lea.vmem %s2, %s438
      %s440 = smul.u32 16, %s22
      %p441 = scmp.lt.s32.totalorder %s22, 1
      %s442 = scalar_select %p441, %s22, 1
      %s443 = smul.addr %s442, 8
      %s444 = scalar_lea.vmem %s3, %s443
      %s445 = smul.u32 16, %s22
      %p446 = scmp.lt.s32.totalorder %s445, 31
      %s447 = scalar_select %p446, %s445, 31
      %s448 = smul.addr %s447, 8
      %s449 = scalar_lea.vmem %s11, %s448
      %s450 = smul.u32 16, %s22
      %v451 = vld [vmem:[%s433] sm:$0xff]
      %v452 = vld [vmem:[%s433 + $0x8] sm:$0xff]
      %v453 = vld [vmem:[%s433 + $0x10] sm:$0xff]
      %v454 = vld [vmem:[%s433 + $0x18] sm:$0xff]
      %v455 = vld [vmem:[%s433 + $0x20] sm:$0xff]
      %v456 = vld [vmem:[%s433 + $0x28] sm:$0xff]
      %v457 = vld [vmem:[%s433 + $0x30] sm:$0xff]
      %v458 = vld [vmem:[%s433 + $0x38] sm:$0xff]
      %v459 = vld [vmem:[%s433 + $0x40] sm:$0xff]
      %v460 = vld [vmem:[%s433 + $0x48] sm:$0xff]
      %v461 = vld [vmem:[%s433 + $0x50] sm:$0xff]
      %v462 = vld [vmem:[%s433 + $0x58] sm:$0xff]
      %v463 = vld [vmem:[%s433 + $0x60] sm:$0xff]
      %v464 = vld [vmem:[%s433 + $0x68] sm:$0xff]
      %v465 = vld [vmem:[%s433 + $0x70] sm:$0xff]
      %v466 = vld [vmem:[%s433 + $0x78] sm:$0xff]
      %v467 = vld [vmem:[%s427] sm:$0xff]
      %v468 = vld [vmem:[%s427 + $0x8] sm:$0xff]
      %v469 = vld [vmem:[%s427 + $0x10] sm:$0xff]
      %v470 = vld [vmem:[%s427 + $0x18] sm:$0xff]
      %v471 = vld [vmem:[%s427 + $0x20] sm:$0xff]
      %v472 = vld [vmem:[%s427 + $0x28] sm:$0xff]
      %v473 = vld [vmem:[%s427 + $0x30] sm:$0xff]
      %v474 = vld [vmem:[%s427 + $0x38] sm:$0xff]
      %v475 = vld [vmem:[%s427 + $0x40] sm:$0xff]
      %v476 = vld [vmem:[%s427 + $0x48] sm:$0xff]
      %v477 = vld [vmem:[%s427 + $0x50] sm:$0xff]
      %v478 = vld [vmem:[%s427 + $0x58] sm:$0xff]
      %v479 = vld [vmem:[%s427 + $0x60] sm:$0xff]
      %v480 = vld [vmem:[%s427 + $0x68] sm:$0xff]
      %v481 = vld [vmem:[%s427 + $0x70] sm:$0xff]
      %v482 = vld [vmem:[%s427 + $0x78] sm:$0xff]
      %484 = vset.pattern.permute.xlu0 0
      %485 = vperm.xlu0 %484, %v451
      %v486 = vpop.permute.xlu0 %485
      %489 = vset.pattern.permute.xlu0 0
      %490 = vperm.xlu0 %489, %v452
      %v491 = vpop.permute.xlu0 %490
      %494 = vset.pattern.permute.xlu0 0
      %495 = vperm.xlu0 %494, %v453
      %v496 = vpop.permute.xlu0 %495
      %499 = vset.pattern.permute.xlu0 0
      %500 = vperm.xlu0 %499, %v454
      %v501 = vpop.permute.xlu0 %500
      %504 = vset.pattern.permute.xlu0 0
      %505 = vperm.xlu0 %504, %v455
      %v506 = vpop.permute.xlu0 %505
      %509 = vset.pattern.permute.xlu0 0
      %510 = vperm.xlu0 %509, %v456
      %v511 = vpop.permute.xlu0 %510
      %514 = vset.pattern.permute.xlu0 0
      %515 = vperm.xlu0 %514, %v457
      %v516 = vpop.permute.xlu0 %515
      %519 = vset.pattern.permute.xlu0 0
      %520 = vperm.xlu0 %519, %v458
      %v521 = vpop.permute.xlu0 %520
      %524 = vset.pattern.permute.xlu0 0
      %525 = vperm.xlu0 %524, %v459
      %v526 = vpop.permute.xlu0 %525
      %529 = vset.pattern.permute.xlu0 0
      %530 = vperm.xlu0 %529, %v460
      %v531 = vpop.permute.xlu0 %530
      %534 = vset.pattern.permute.xlu0 0
      %535 = vperm.xlu0 %534, %v461
      %v536 = vpop.permute.xlu0 %535
      %539 = vset.pattern.permute.xlu0 0
      %540 = vperm.xlu0 %539, %v462
      %v541 = vpop.permute.xlu0 %540
      %544 = vset.pattern.permute.xlu0 0
      %545 = vperm.xlu0 %544, %v463
      %v546 = vpop.permute.xlu0 %545
      %549 = vset.pattern.permute.xlu0 0
      %550 = vperm.xlu0 %549, %v464
      %v551 = vpop.permute.xlu0 %550
      %554 = vset.pattern.permute.xlu0 0
      %555 = vperm.xlu0 %554, %v465
      %v556 = vpop.permute.xlu0 %555
      %559 = vset.pattern.permute.xlu0 0
      %560 = vperm.xlu0 %559, %v466
      %v561 = vpop.permute.xlu0 %560
      %v563 = vmul.f32 %v467, %v486
      %v564 = vmul.f32 %v468, %v491
      %v565 = vmul.f32 %v469, %v496
      %v566 = vmul.f32 %v470, %v501
      %v567 = vmul.f32 %v471, %v506
      %v568 = vmul.f32 %v472, %v511
      %v569 = vmul.f32 %v473, %v516
      %v570 = vmul.f32 %v474, %v521
      %v571 = vmul.f32 %v475, %v526
      %v572 = vmul.f32 %v476, %v531
      %v573 = vmul.f32 %v477, %v536
      %v574 = vmul.f32 %v478, %v541
      %v575 = vmul.f32 %v479, %v546
      %v576 = vmul.f32 %v480, %v551
      %v577 = vmul.f32 %v481, %v556
      %v578 = vmul.f32 %v482, %v561
      %v579 = vld [vmem:[%s5] sm:$0xff]
      %v580 = vld [vmem:[%s5 + $0x8] sm:$0xff]
      %v581 = vld [vmem:[%s5 + $0x10] sm:$0xff]
      %v582 = vld [vmem:[%s5 + $0x18] sm:$0xff]
      %v583 = vld [vmem:[%s5 + $0x20] sm:$0x7f]
      %v584 = vld [vmem:[%s6] sm:$0x1f]
      %vm585 = vcmask 39936
      %v586 = vsel %vm585, %v451, 0
      %v588 = vsel %vm585, %v452, 0
      %v590 = vsel %vm585, %v453, 0
      %v592 = vsel %vm585, %v454, 0
      %v594 = vsel %vm585, %v455, 0
      %v596 = vsel %vm585, %v456, 0
      %v598 = vsel %vm585, %v457, 0
      %v600 = vsel %vm585, %v458, 0
      %v602 = vsel %vm585, %v459, 0
      %v604 = vsel %vm585, %v460, 0
      %v606 = vsel %vm585, %v461, 0
      %v608 = vsel %vm585, %v462, 0
      %v610 = vsel %vm585, %v463, 0
      %v612 = vsel %vm585, %v464, 0
      %v614 = vsel %vm585, %v465, 0
      %v616 = vsel %vm585, %v466, 0
      %vm618 = vcmask 1044480
      %v620 = vsel %vm618, %v584, 0
      %622 = vmatprep.subr.mxu0 0.0
      %623 = vmatpush1.msra.mxu0 0.0
      %624 = vmatprep.subr.mxu0 0.0
      %625 = vmatpush1.msra.mxu0 0.0
      %626 = vmatprep.subr.mxu0 0.0
      %627 = vmatpush1.msra.mxu0 0.0
      %628 = vmatprep.subr.mxu0 0.0
      %629 = vmatpush1.msra.mxu0 0.0
      %630 = vmatprep.subr.mxu0 0.0
      %631 = vmatpush1.msra.mxu0 0.0
      %632 = vmatprep.subr.mxu0 0.0
      %633 = vmatpush1.msra.mxu0 0.0
      %634 = vmatprep.subr.mxu0 0.0
      %635 = vmatpush1.msra.mxu0 0.0
      %636 = vmatprep.subr.mxu0 0.0
      %637 = vmatpush1.msra.mxu0 0.0
      %638 = vmatprep.subr.mxu0 0.0
      %639 = vmatpush1.msra.mxu0 0.0
      %640 = vmatprep.subr.mxu0 0.0
      %641 = vmatpush1.msra.mxu0 0.0
      %642 = vmatprep.subr.mxu0 0.0
      %643 = vmatpush1.msra.mxu0 0.0
      %644 = vmatprep.subr.mxu0 0.0
      %645 = vmatpush1.msra.mxu0 0.0
      %646 = vmatprep.subr.mxu0 0.0
      %647 = vmatpush1.msra.mxu0 0.0
      %648 = vmatprep.subr.mxu0 0.0
      %649 = vmatpush1.msra.mxu0 0.0
      %650 = vmatprep.subr.mxu0 0.0
      %651 = vmatpush1.msra.mxu0 0.0
      %652 = vmatprep.subr.mxu0 0.0
      %653 = vmatpush1.msra.mxu0 %v620
      %654 = vmatprep.subr.mxu0 0.0
      %655 = vmatpush2.msra.mxu0 0.0
      %656 = vmatprep.subr.mxu0 0.0
      %657 = vmatpush2.msra.mxu0 0.0
      %658 = vmatprep.subr.mxu0 0.0
      %659 = vmatpush2.msra.mxu0 0.0
      %660 = vmatprep.subr.mxu0 0.0
      %661 = vmatpush2.msra.mxu0 0.0
      %662 = vmatprep.subr.mxu0 0.0
      %663 = vmatpush2.msra.mxu0 0.0
      %664 = vmatprep.subr.mxu0 0.0
      %665 = vmatpush2.msra.mxu0 0.0
      %666 = vmatprep.subr.mxu0 0.0
      %667 = vmatpush2.msra.mxu0 0.0
      %668 = vmatprep.subr.mxu0 0.0
      %669 = vmatpush2.msra.mxu0 0.0
      %670 = vmatprep.subr.mxu0 0.0
      %671 = vmatpush2.msra.mxu0 0.0
      %672 = vmatprep.subr.mxu0 0.0
      %673 = vmatpush2.msra.mxu0 0.0
      %674 = vmatprep.subr.mxu0 0.0
      %675 = vmatpush2.msra.mxu0 0.0
      %676 = vmatprep.subr.mxu0 0.0
      %677 = vmatpush2.msra.mxu0 0.0
      %678 = vmatprep.subr.mxu0 0.0
      %679 = vmatpush2.msra.mxu0 0.0
      %680 = vmatprep.subr.mxu0 0.0
      %681 = vmatpush2.msra.mxu0 0.0
      %682 = vmatprep.subr.mxu0 0.0
      %683 = vmatpush2.msra.mxu0 0.0
      %684 = vmatprep.subr.mxu0 0.0
      %685 = vmatpush2.msra.mxu0 0.0
      %686 = vmatprep.mubr.f32.mxu0 0.0
      %687 = vmatmul.mubr.f32.gmra.mxu0 %v586
      %v688 = vpop.f32.mrf.mxu0
      %v689 = vadd.f32 0.0, %v688
      %v690 = vpop.f32.mrf.mxu0
      %691 = vmatprep.mubr.f32.mxu0 0.0
      %692 = vmatmul.mubr.f32.gmra.mxu0 %v588
      %v693 = vpop.f32.mrf.mxu0
      %v694 = vadd.f32 0.0, %v693
      %v695 = vpop.f32.mrf.mxu0
      %696 = vmatprep.mubr.f32.mxu0 0.0
      %697 = vmatmul.mubr.f32.gmra.mxu0 %v590
      %v698 = vpop.f32.mrf.mxu0
      %v699 = vadd.f32 0.0, %v698
      %v700 = vpop.f32.mrf.mxu0
      %701 = vmatprep.mubr.f32.mxu0 0.0
      %702 = vmatmul.mubr.f32.gmra.mxu0 %v592
      %v703 = vpop.f32.mrf.mxu0
      %v704 = vadd.f32 0.0, %v703
      %v705 = vpop.f32.mrf.mxu0
      %706 = vmatprep.mubr.f32.mxu0 0.0
      %707 = vmatmul.mubr.f32.gmra.mxu0 %v594
      %v708 = vpop.f32.mrf.mxu0
      %v709 = vadd.f32 0.0, %v708
      %v710 = vpop.f32.mrf.mxu0
      %711 = vmatprep.mubr.f32.mxu0 0.0
      %712 = vmatmul.mubr.f32.gmra.mxu0 %v596
      %v713 = vpop.f32.mrf.mxu0
      %v714 = vadd.f32 0.0, %v713
      %v715 = vpop.f32.mrf.mxu0
      %716 = vmatprep.mubr.f32.mxu0 0.0
      %717 = vmatmul.mubr.f32.gmra.mxu0 %v598
      %v718 = vpop.f32.mrf.mxu0
      %v719 = vadd.f32 0.0, %v718
      %v720 = vpop.f32.mrf.mxu0
      %721 = vmatprep.mubr.f32.mxu0 0.0
      %722 = vmatmul.mubr.f32.gmra.mxu0 %v600
      %v723 = vpop.f32.mrf.mxu0
      %v724 = vadd.f32 0.0, %v723
      %v725 = vpop.f32.mrf.mxu0
      %726 = vmatprep.mubr.f32.mxu0 0.0
      %727 = vmatmul.mubr.f32.gmra.mxu0 %v602
      %v728 = vpop.f32.mrf.mxu0
      %v729 = vadd.f32 0.0, %v728
      %v730 = vpop.f32.mrf.mxu0
      %731 = vmatprep.mubr.f32.mxu0 0.0
      %732 = vmatmul.mubr.f32.gmra.mxu0 %v604
      %v733 = vpop.f32.mrf.mxu0
      %v734 = vadd.f32 0.0, %v733
      %v735 = vpop.f32.mrf.mxu0
      %736 = vmatprep.mubr.f32.mxu0 0.0
      %737 = vmatmul.mubr.f32.gmra.mxu0 %v606
      %v738 = vpop.f32.mrf.mxu0
      %v739 = vadd.f32 0.0, %v738
      %v740 = vpop.f32.mrf.mxu0
      %741 = vmatprep.mubr.f32.mxu0 0.0
      %742 = vmatmul.mubr.f32.gmra.mxu0 %v608
      %v743 = vpop.f32.mrf.mxu0
      %v744 = vadd.f32 0.0, %v743
      %v745 = vpop.f32.mrf.mxu0
      %746 = vmatprep.mubr.f32.mxu0 0.0
      %747 = vmatmul.mubr.f32.gmra.mxu0 %v610
      %v748 = vpop.f32.mrf.mxu0
      %v749 = vadd.f32 0.0, %v748
      %v750 = vpop.f32.mrf.mxu0
      %751 = vmatprep.mubr.f32.mxu0 0.0
      %752 = vmatmul.mubr.f32.gmra.mxu0 %v612
      %v753 = vpop.f32.mrf.mxu0
      %v754 = vadd.f32 0.0, %v753
      %v755 = vpop.f32.mrf.mxu0
      %756 = vmatprep.mubr.f32.mxu0 0.0
      %757 = vmatmul.mubr.f32.gmra.mxu0 %v614
      %v758 = vpop.f32.mrf.mxu0
      %v759 = vadd.f32 0.0, %v758
      %v760 = vpop.f32.mrf.mxu0
      %761 = vmatprep.mubr.f32.mxu0 0.0
      %762 = vmatmul.mubr.f32.gmra.mxu0 %v616
      %v763 = vpop.f32.mrf.mxu0
      %v764 = vadd.f32 0.0, %v763
      %v765 = vpop.f32.mrf.mxu0
      %766 = vdwg.mxu0
      %vm767 = vcmask 318464
      %v769 = vsel %vm767, %v563, 0
      %v772 = vsel %vm767, %v564, 0
      %v775 = vsel %vm767, %v565, 0
      %v778 = vsel %vm767, %v566, 0
      %v781 = vsel %vm767, %v567, 0
      %v784 = vsel %vm767, %v568, 0
      %v787 = vsel %vm767, %v569, 0
      %v790 = vsel %vm767, %v570, 0
      %v793 = vsel %vm767, %v571, 0
      %v796 = vsel %vm767, %v572, 0
      %v799 = vsel %vm767, %v573, 0
      %v802 = vsel %vm767, %v574, 0
      %v805 = vsel %vm767, %v575, 0
      %v808 = vsel %vm767, %v576, 0
      %v811 = vsel %vm767, %v577, 0
      %v814 = vsel %vm767, %v578, 0
      %vm816 = vcmask 1046528
      %v818 = vsel %vm816, %v583, 0
      %820 = vmatprep.subr.mxu0 0.0
      %821 = vmatpush1.msra.mxu0 0.0
      %822 = vmatprep.subr.mxu0 0.0
      %823 = vmatpush1.msra.mxu0 0.0
      %824 = vmatprep.subr.mxu0 0.0
      %825 = vmatpush1.msra.mxu0 0.0
      %826 = vmatprep.subr.mxu0 0.0
      %827 = vmatpush1.msra.mxu0 0.0
      %828 = vmatprep.subr.mxu0 0.0
      %829 = vmatpush1.msra.mxu0 0.0
      %830 = vmatprep.subr.mxu0 0.0
      %831 = vmatpush1.msra.mxu0 0.0
      %832 = vmatprep.subr.mxu0 0.0
      %833 = vmatpush1.msra.mxu0 0.0
      %834 = vmatprep.subr.mxu0 0.0
      %835 = vmatpush1.msra.mxu0 0.0
      %836 = vmatprep.subr.mxu0 0.0
      %837 = vmatpush1.msra.mxu0 0.0
      %838 = vmatprep.subr.mxu0 0.0
      %839 = vmatpush1.msra.mxu0 0.0
      %840 = vmatprep.subr.mxu0 0.0
      %841 = vmatpush1.msra.mxu0 0.0
      %842 = vmatprep.subr.mxu0 0.0
      %843 = vmatpush1.msra.mxu0 %v818
      %844 = vmatprep.subr.mxu0 0.0
      %845 = vmatpush1.msra.mxu0 %v582
      %846 = vmatprep.subr.mxu0 0.0
      %847 = vmatpush1.msra.mxu0 %v581
      %848 = vmatprep.subr.mxu0 0.0
      %849 = vmatpush1.msra.mxu0 %v580
      %850 = vmatprep.subr.mxu0 0.0
      %851 = vmatpush1.msra.mxu0 %v579
      %852 = vmatprep.subr.mxu0 0.0
      %853 = vmatpush2.msra.mxu0 0.0
      %854 = vmatprep.subr.mxu0 0.0
      %855 = vmatpush2.msra.mxu0 0.0
      %856 = vmatprep.subr.mxu0 0.0
      %857 = vmatpush2.msra.mxu0 0.0
      %858 = vmatprep.subr.mxu0 0.0
      %859 = vmatpush2.msra.mxu0 0.0
      %860 = vmatprep.subr.mxu0 0.0
      %861 = vmatpush2.msra.mxu0 0.0
      %862 = vmatprep.subr.mxu0 0.0
      %863 = vmatpush2.msra.mxu0 0.0
      %864 = vmatprep.subr.mxu0 0.0
      %865 = vmatpush2.msra.mxu0 0.0
      %866 = vmatprep.subr.mxu0 0.0
      %867 = vmatpush2.msra.mxu0 0.0
      %868 = vmatprep.subr.mxu0 0.0
      %869 = vmatpush2.msra.mxu0 0.0
      %870 = vmatprep.subr.mxu0 0.0
      %871 = vmatpush2.msra.mxu0 0.0
      %872 = vmatprep.subr.mxu0 0.0
      %873 = vmatpush2.msra.mxu0 0.0
      %874 = vmatprep.subr.mxu0 0.0
      %875 = vmatpush2.msra.mxu0 0.0
      %876 = vmatprep.subr.mxu0 0.0
      %877 = vmatpush2.msra.mxu0 0.0
      %878 = vmatprep.subr.mxu0 0.0
      %879 = vmatpush2.msra.mxu0 0.0
      %880 = vmatprep.subr.mxu0 0.0
      %881 = vmatpush2.msra.mxu0 0.0
      %882 = vmatprep.subr.mxu0 0.0
      %883 = vmatpush2.msra.mxu0 0.0
      %884 = vmatprep.mubr.f32.mxu0 0.0
      %885 = vmatmul.mubr.f32.gmra.mxu0 %v769
      %v886 = vpop.f32.mrf.mxu0
      %v887 = vadd.f32 %v689, %v886
      %v888 = vpop.f32.mrf.mxu0
      %889 = vmatprep.mubr.f32.mxu0 0.0
      %890 = vmatmul.mubr.f32.gmra.mxu0 %v772
      %v891 = vpop.f32.mrf.mxu0
      %v892 = vadd.f32 %v694, %v891
      %v893 = vpop.f32.mrf.mxu0
      %894 = vmatprep.mubr.f32.mxu0 0.0
      %895 = vmatmul.mubr.f32.gmra.mxu0 %v775
      %v896 = vpop.f32.mrf.mxu0
      %v897 = vadd.f32 %v699, %v896
      %v898 = vpop.f32.mrf.mxu0
      %899 = vmatprep.mubr.f32.mxu0 0.0
      %900 = vmatmul.mubr.f32.gmra.mxu0 %v778
      %v901 = vpop.f32.mrf.mxu0
      %v902 = vadd.f32 %v704, %v901
      %v903 = vpop.f32.mrf.mxu0
      %904 = vmatprep.mubr.f32.mxu0 0.0
      %905 = vmatmul.mubr.f32.gmra.mxu0 %v781
      %v906 = vpop.f32.mrf.mxu0
      %v907 = vadd.f32 %v709, %v906
      %v908 = vpop.f32.mrf.mxu0
      %909 = vmatprep.mubr.f32.mxu0 0.0
      %910 = vmatmul.mubr.f32.gmra.mxu0 %v784
      %v911 = vpop.f32.mrf.mxu0
      %v912 = vadd.f32 %v714, %v911
      %v913 = vpop.f32.mrf.mxu0
      %914 = vmatprep.mubr.f32.mxu0 0.0
      %915 = vmatmul.mubr.f32.gmra.mxu0 %v787
      %v916 = vpop.f32.mrf.mxu0
      %v917 = vadd.f32 %v719, %v916
      %v918 = vpop.f32.mrf.mxu0
      %919 = vmatprep.mubr.f32.mxu0 0.0
      %920 = vmatmul.mubr.f32.gmra.mxu0 %v790
      %v921 = vpop.f32.mrf.mxu0
      %v922 = vadd.f32 %v724, %v921
      %v923 = vpop.f32.mrf.mxu0
      %924 = vmatprep.mubr.f32.mxu0 0.0
      %925 = vmatmul.mubr.f32.gmra.mxu0 %v793
      %v926 = vpop.f32.mrf.mxu0
      %v927 = vadd.f32 %v729, %v926
      %v928 = vpop.f32.mrf.mxu0
      %929 = vmatprep.mubr.f32.mxu0 0.0
      %930 = vmatmul.mubr.f32.gmra.mxu0 %v796
      %v931 = vpop.f32.mrf.mxu0
      %v932 = vadd.f32 %v734, %v931
      %v933 = vpop.f32.mrf.mxu0
      %934 = vmatprep.mubr.f32.mxu0 0.0
      %935 = vmatmul.mubr.f32.gmra.mxu0 %v799
      %v936 = vpop.f32.mrf.mxu0
      %v937 = vadd.f32 %v739, %v936
      %v938 = vpop.f32.mrf.mxu0
      %939 = vmatprep.mubr.f32.mxu0 0.0
      %940 = vmatmul.mubr.f32.gmra.mxu0 %v802
      %v941 = vpop.f32.mrf.mxu0
      %v942 = vadd.f32 %v744, %v941
      %v943 = vpop.f32.mrf.mxu0
      %944 = vmatprep.mubr.f32.mxu0 0.0
      %945 = vmatmul.mubr.f32.gmra.mxu0 %v805
      %v946 = vpop.f32.mrf.mxu0
      %v947 = vadd.f32 %v749, %v946
      %v948 = vpop.f32.mrf.mxu0
      %949 = vmatprep.mubr.f32.mxu0 0.0
      %950 = vmatmul.mubr.f32.gmra.mxu0 %v808
      %v951 = vpop.f32.mrf.mxu0
      %v952 = vadd.f32 %v754, %v951
      %v953 = vpop.f32.mrf.mxu0
      %954 = vmatprep.mubr.f32.mxu0 0.0
      %955 = vmatmul.mubr.f32.gmra.mxu0 %v811
      %v956 = vpop.f32.mrf.mxu0
      %v957 = vadd.f32 %v759, %v956
      %v958 = vpop.f32.mrf.mxu0
      %959 = vmatprep.mubr.f32.mxu0 0.0
      %960 = vmatmul.mubr.f32.gmra.mxu0 %v814
      %v961 = vpop.f32.mrf.mxu0
      %v962 = vadd.f32 %v764, %v961
      %v963 = vpop.f32.mrf.mxu0
      %964 = vdwg.mxu0
      %v965 = vld [vmem:[%s439] sm:$0xff]
      %v966 = vld [vmem:[%s439 + $0x8] sm:$0xff]
      %v967 = vld [vmem:[%s439 + $0x10] sm:$0xff]
      %v968 = vld [vmem:[%s439 + $0x18] sm:$0xff]
      %v969 = vld [vmem:[%s439 + $0x20] sm:$0xff]
      %v970 = vld [vmem:[%s439 + $0x28] sm:$0xff]
      %v971 = vld [vmem:[%s439 + $0x30] sm:$0xff]
      %v972 = vld [vmem:[%s439 + $0x38] sm:$0xff]
      %v973 = vld [vmem:[%s439 + $0x40] sm:$0xff]
      %v974 = vld [vmem:[%s439 + $0x48] sm:$0xff]
      %v975 = vld [vmem:[%s439 + $0x50] sm:$0xff]
      %v976 = vld [vmem:[%s439 + $0x58] sm:$0xff]
      %v977 = vld [vmem:[%s439 + $0x60] sm:$0xff]
      %v978 = vld [vmem:[%s439 + $0x68] sm:$0xff]
      %v979 = vld [vmem:[%s439 + $0x70] sm:$0xff]
      %v980 = vld [vmem:[%s439 + $0x78] sm:$0xff]
      %vm981 = vcmask 523264
      %v982 = vsel %vm981, %v965, 0.0
      %983 = vadd.xlane.f32.xlu0 %v982
      %v984 = vpop.xlane.xlu0 %983
      %v985 = vsel %vm981, %v966, 0.0
      %986 = vadd.xlane.f32.xlu0 %v985
      %v987 = vpop.xlane.xlu0 %986
      %v988 = vsel %vm981, %v967, 0.0
      %989 = vadd.xlane.f32.xlu0 %v988
      %v990 = vpop.xlane.xlu0 %989
      %v991 = vsel %vm981, %v968, 0.0
      %992 = vadd.xlane.f32.xlu0 %v991
      %v993 = vpop.xlane.xlu0 %992
      %v994 = vsel %vm981, %v969, 0.0
      %995 = vadd.xlane.f32.xlu0 %v994
      %v996 = vpop.xlane.xlu0 %995
      %v997 = vsel %vm981, %v970, 0.0
      %998 = vadd.xlane.f32.xlu0 %v997
      %v999 = vpop.xlane.xlu0 %998
      %v1000 = vsel %vm981, %v971, 0.0
      %1001 = vadd.xlane.f32.xlu0 %v1000
      %v1002 = vpop.xlane.xlu0 %1001
      %v1003 = vsel %vm981, %v972, 0.0
      %1004 = vadd.xlane.f32.xlu0 %v1003
      %v1005 = vpop.xlane.xlu0 %1004
      %v1006 = vsel %vm981, %v973, 0.0
      %1007 = vadd.xlane.f32.xlu0 %v1006
      %v1008 = vpop.xlane.xlu0 %1007
      %v1009 = vsel %vm981, %v974, 0.0
      %1010 = vadd.xlane.f32.xlu0 %v1009
      %v1011 = vpop.xlane.xlu0 %1010
      %v1012 = vsel %vm981, %v975, 0.0
      %1013 = vadd.xlane.f32.xlu0 %v1012
      %v1014 = vpop.xlane.xlu0 %1013
      %v1015 = vsel %vm981, %v976, 0.0
      %1016 = vadd.xlane.f32.xlu0 %v1015
      %v1017 = vpop.xlane.xlu0 %1016
      %v1018 = vsel %vm981, %v977, 0.0
      %1019 = vadd.xlane.f32.xlu0 %v1018
      %v1020 = vpop.xlane.xlu0 %1019
      %v1021 = vsel %vm981, %v978, 0.0
      %1022 = vadd.xlane.f32.xlu0 %v1021
      %v1023 = vpop.xlane.xlu0 %1022
      %v1024 = vsel %vm981, %v979, 0.0
      %1025 = vadd.xlane.f32.xlu0 %v1024
      %v1026 = vpop.xlane.xlu0 %1025
      %v1027 = vsel %vm981, %v980, 0.0
      %1028 = vadd.xlane.f32.xlu0 %v1027
      %v1029 = vpop.xlane.xlu0 %1028
      %v1030 = vrcp.pop 64.0
      %v1031 = vmul.f32 %v984, %v1030
      %v1032 = vmul.f32 %v987, %v1030
      %v1033 = vmul.f32 %v990, %v1030
      %v1034 = vmul.f32 %v993, %v1030
      %v1035 = vmul.f32 %v996, %v1030
      %v1036 = vmul.f32 %v999, %v1030
      %v1037 = vmul.f32 %v1002, %v1030
      %v1038 = vmul.f32 %v1005, %v1030
      %v1039 = vmul.f32 %v1008, %v1030
      %v1040 = vmul.f32 %v1011, %v1030
      %v1041 = vmul.f32 %v1014, %v1030
      %v1042 = vmul.f32 %v1017, %v1030
      %v1043 = vmul.f32 %v1020, %v1030
      %v1044 = vmul.f32 %v1023, %v1030
      %v1045 = vmul.f32 %v1026, %v1030
      %v1046 = vmul.f32 %v1029, %v1030
      %v1047 = vsub.f32 %v965, %v1031
      %v1048 = vsub.f32 %v966, %v1032
      %v1049 = vsub.f32 %v967, %v1033
      %v1050 = vsub.f32 %v968, %v1034
      %v1051 = vsub.f32 %v969, %v1035
      %v1052 = vsub.f32 %v970, %v1036
      %v1053 = vsub.f32 %v971, %v1037
      %v1054 = vsub.f32 %v972, %v1038
      %v1055 = vsub.f32 %v973, %v1039
      %v1056 = vsub.f32 %v974, %v1040
      %v1057 = vsub.f32 %v975, %v1041
      %v1058 = vsub.f32 %v976, %v1042
      %v1059 = vsub.f32 %v977, %v1043
      %v1060 = vsub.f32 %v978, %v1044
      %v1061 = vsub.f32 %v979, %v1045
      %v1062 = vsub.f32 %v980, %v1046
      %v1063 = vmul.f32 %v1047, %v1047
      %v1064 = vmul.f32 %v1048, %v1048
      %v1065 = vmul.f32 %v1049, %v1049
      %v1066 = vmul.f32 %v1050, %v1050
      %v1067 = vmul.f32 %v1051, %v1051
      %v1068 = vmul.f32 %v1052, %v1052
      %v1069 = vmul.f32 %v1053, %v1053
      %v1070 = vmul.f32 %v1054, %v1054
      %v1071 = vmul.f32 %v1055, %v1055
      %v1072 = vmul.f32 %v1056, %v1056
      %v1073 = vmul.f32 %v1057, %v1057
      %v1074 = vmul.f32 %v1058, %v1058
      %v1075 = vmul.f32 %v1059, %v1059
      %v1076 = vmul.f32 %v1060, %v1060
      %v1077 = vmul.f32 %v1061, %v1061
      %v1078 = vmul.f32 %v1062, %v1062
      %v1079 = vsel %vm981, %v1063, 0.0
      %1080 = vadd.xlane.f32.xlu0 %v1079
      %v1081 = vpop.xlane.xlu0 %1080
      %v1082 = vsel %vm981, %v1064, 0.0
      %1083 = vadd.xlane.f32.xlu0 %v1082
      %v1084 = vpop.xlane.xlu0 %1083
      %v1085 = vsel %vm981, %v1065, 0.0
      %1086 = vadd.xlane.f32.xlu0 %v1085
      %v1087 = vpop.xlane.xlu0 %1086
      %v1088 = vsel %vm981, %v1066, 0.0
      %1089 = vadd.xlane.f32.xlu0 %v1088
      %v1090 = vpop.xlane.xlu0 %1089
      %v1091 = vsel %vm981, %v1067, 0.0
      %1092 = vadd.xlane.f32.xlu0 %v1091
      %v1093 = vpop.xlane.xlu0 %1092
      %v1094 = vsel %vm981, %v1068, 0.0
      %1095 = vadd.xlane.f32.xlu0 %v1094
      %v1096 = vpop.xlane.xlu0 %1095
      %v1097 = vsel %vm981, %v1069, 0.0
      %1098 = vadd.xlane.f32.xlu0 %v1097
      %v1099 = vpop.xlane.xlu0 %1098
      %v1100 = vsel %vm981, %v1070, 0.0
      %1101 = vadd.xlane.f32.xlu0 %v1100
      %v1102 = vpop.xlane.xlu0 %1101
      %v1103 = vsel %vm981, %v1071, 0.0
      %1104 = vadd.xlane.f32.xlu0 %v1103
      %v1105 = vpop.xlane.xlu0 %1104
      %v1106 = vsel %vm981, %v1072, 0.0
      %1107 = vadd.xlane.f32.xlu0 %v1106
      %v1108 = vpop.xlane.xlu0 %1107
      %v1109 = vsel %vm981, %v1073, 0.0
      %1110 = vadd.xlane.f32.xlu0 %v1109
      %v1111 = vpop.xlane.xlu0 %1110
      %v1112 = vsel %vm981, %v1074, 0.0
      %1113 = vadd.xlane.f32.xlu0 %v1112
      %v1114 = vpop.xlane.xlu0 %1113
      %v1115 = vsel %vm981, %v1075, 0.0
      %1116 = vadd.xlane.f32.xlu0 %v1115
      %v1117 = vpop.xlane.xlu0 %1116
      %v1118 = vsel %vm981, %v1076, 0.0
      %1119 = vadd.xlane.f32.xlu0 %v1118
      %v1120 = vpop.xlane.xlu0 %1119
      %v1121 = vsel %vm981, %v1077, 0.0
      %1122 = vadd.xlane.f32.xlu0 %v1121
      %v1123 = vpop.xlane.xlu0 %1122
      %v1124 = vsel %vm981, %v1078, 0.0
      %1125 = vadd.xlane.f32.xlu0 %v1124
      %v1126 = vpop.xlane.xlu0 %1125
      %v1127 = vmul.f32 %v1081, %v1030
      %v1128 = vmul.f32 %v1084, %v1030
      %v1129 = vmul.f32 %v1087, %v1030
      %v1130 = vmul.f32 %v1090, %v1030
      %v1131 = vmul.f32 %v1093, %v1030
      %v1132 = vmul.f32 %v1096, %v1030
      %v1133 = vmul.f32 %v1099, %v1030
      %v1134 = vmul.f32 %v1102, %v1030
      %v1135 = vmul.f32 %v1105, %v1030
      %v1136 = vmul.f32 %v1108, %v1030
      %v1137 = vmul.f32 %v1111, %v1030
      %v1138 = vmul.f32 %v1114, %v1030
      %v1139 = vmul.f32 %v1117, %v1030
      %v1140 = vmul.f32 %v1120, %v1030
      %v1141 = vmul.f32 %v1123, %v1030
      %v1142 = vmul.f32 %v1126, %v1030
      %v1143 = vadd.f32 %v1127, 1e-05
      %v1144 = vadd.f32 %v1128, 1e-05
      %v1145 = vadd.f32 %v1129, 1e-05
      %v1146 = vadd.f32 %v1130, 1e-05
      %v1147 = vadd.f32 %v1131, 1e-05
      %v1148 = vadd.f32 %v1132, 1e-05
      %v1149 = vadd.f32 %v1133, 1e-05
      %v1150 = vadd.f32 %v1134, 1e-05
      %v1151 = vadd.f32 %v1135, 1e-05
      %v1152 = vadd.f32 %v1136, 1e-05
      %v1153 = vadd.f32 %v1137, 1e-05
      %v1154 = vadd.f32 %v1138, 1e-05
      %v1155 = vadd.f32 %v1139, 1e-05
      %v1156 = vadd.f32 %v1140, 1e-05
      %v1157 = vadd.f32 %v1141, 1e-05
      %v1158 = vadd.f32 %v1142, 1e-05
      %v1159 = vrsqrt.pop %v1143
      %v1160 = vrsqrt.pop %v1144
      %v1161 = vrsqrt.pop %v1145
      %v1162 = vrsqrt.pop %v1146
      %v1163 = vrsqrt.pop %v1147
      %v1164 = vrsqrt.pop %v1148
      %v1165 = vrsqrt.pop %v1149
      %v1166 = vrsqrt.pop %v1150
      %v1167 = vrsqrt.pop %v1151
      %v1168 = vrsqrt.pop %v1152
      %v1169 = vrsqrt.pop %v1153
      %v1170 = vrsqrt.pop %v1154
      %v1171 = vrsqrt.pop %v1155
      %v1172 = vrsqrt.pop %v1156
      %v1173 = vrsqrt.pop %v1157
      %v1174 = vrsqrt.pop %v1158
      %v1175 = vmul.f32 %v1047, %v1159
      %v1176 = vmul.f32 %v1048, %v1160
      %v1177 = vmul.f32 %v1049, %v1161
      %v1178 = vmul.f32 %v1050, %v1162
      %v1179 = vmul.f32 %v1051, %v1163
      %v1180 = vmul.f32 %v1052, %v1164
      %v1181 = vmul.f32 %v1053, %v1165
      %v1182 = vmul.f32 %v1054, %v1166
      %v1183 = vmul.f32 %v1055, %v1167
      %v1184 = vmul.f32 %v1056, %v1168
      %v1185 = vmul.f32 %v1057, %v1169
      %v1186 = vmul.f32 %v1058, %v1170
      %v1187 = vmul.f32 %v1059, %v1171
      %v1188 = vmul.f32 %v1060, %v1172
      %v1189 = vmul.f32 %v1061, %v1173
      %v1190 = vmul.f32 %v1062, %v1174
      %v1191 = vld [vmem:[%s8] sm:$0x1]
      %v1193 = vlaneseq
      %v1194 = vshrl.u32 %v1193, 7
      %v1195 = vsub.s32 0, %v1194
      %v1196 = vrot.slane %v1191, %v1195
      %v1198 = vmul.f32 %v1175, %v1196
      %v1199 = vmul.f32 %v1176, %v1196
      %v1200 = vmul.f32 %v1177, %v1196
      %v1201 = vmul.f32 %v1178, %v1196
      %v1202 = vmul.f32 %v1179, %v1196
      %v1203 = vmul.f32 %v1180, %v1196
      %v1204 = vmul.f32 %v1181, %v1196
      %v1205 = vmul.f32 %v1182, %v1196
      %v1206 = vmul.f32 %v1183, %v1196
      %v1207 = vmul.f32 %v1184, %v1196
      %v1208 = vmul.f32 %v1185, %v1196
      %v1209 = vmul.f32 %v1186, %v1196
      %v1210 = vmul.f32 %v1187, %v1196
      %v1211 = vmul.f32 %v1188, %v1196
      %v1212 = vmul.f32 %v1189, %v1196
      %v1213 = vmul.f32 %v1190, %v1196
      %v1214 = vld [vmem:[%s9] sm:$0x1]
      %v1216 = vlaneseq
      %v1217 = vshrl.u32 %v1216, 7
      %v1218 = vsub.s32 0, %v1217
      %v1219 = vrot.slane %v1214, %v1218
      %v1221 = vadd.f32 %v1198, %v1219
      %v1222 = vadd.f32 %v1199, %v1219
      %v1223 = vadd.f32 %v1200, %v1219
      %v1224 = vadd.f32 %v1201, %v1219
      %v1225 = vadd.f32 %v1202, %v1219
      %v1226 = vadd.f32 %v1203, %v1219
      %v1227 = vadd.f32 %v1204, %v1219
      %v1228 = vadd.f32 %v1205, %v1219
      %v1229 = vadd.f32 %v1206, %v1219
      %v1230 = vadd.f32 %v1207, %v1219
      %v1231 = vadd.f32 %v1208, %v1219
      %v1232 = vadd.f32 %v1209, %v1219
      %v1233 = vadd.f32 %v1210, %v1219
      %v1234 = vadd.f32 %v1211, %v1219
      %v1235 = vadd.f32 %v1212, %v1219
      %v1236 = vadd.f32 %v1213, %v1219
      %v1237 = vld [vmem:[%s7] sm:$0xff]
      %v1238 = vld [vmem:[%s7 + $0x8] sm:$0xff]
      %v1239 = vld [vmem:[%s7 + $0x10] sm:$0xff]
      %v1240 = vld [vmem:[%s7 + $0x18] sm:$0xff]
      %v1241 = vld [vmem:[%s7 + $0x20] sm:$0xff]
      %v1242 = vld [vmem:[%s7 + $0x28] sm:$0xff]
      %v1243 = vld [vmem:[%s7 + $0x30] sm:$0xff]
      %v1244 = vld [vmem:[%s7 + $0x38] sm:$0xff]
      %v1246 = vsel %vm981, %v1221, 0
      %v1249 = vsel %vm981, %v1222, 0
      %v1252 = vsel %vm981, %v1223, 0
      %v1255 = vsel %vm981, %v1224, 0
      %v1258 = vsel %vm981, %v1225, 0
      %v1261 = vsel %vm981, %v1226, 0
      %v1264 = vsel %vm981, %v1227, 0
      %v1267 = vsel %vm981, %v1228, 0
      %v1270 = vsel %vm981, %v1229, 0
      %v1273 = vsel %vm981, %v1230, 0
      %v1276 = vsel %vm981, %v1231, 0
      %v1279 = vsel %vm981, %v1232, 0
      %v1282 = vsel %vm981, %v1233, 0
      %v1285 = vsel %vm981, %v1234, 0
      %v1288 = vsel %vm981, %v1235, 0
      %v1291 = vsel %vm981, %v1236, 0
      %1293 = vmatprep.subr.mxu0 0.0
      %1294 = vmatpush1.msra.mxu0 0.0
      %1295 = vmatprep.subr.mxu0 0.0
      %1296 = vmatpush1.msra.mxu0 0.0
      %1297 = vmatprep.subr.mxu0 0.0
      %1298 = vmatpush1.msra.mxu0 0.0
      %1299 = vmatprep.subr.mxu0 0.0
      %1300 = vmatpush1.msra.mxu0 0.0
      %1301 = vmatprep.subr.mxu0 0.0
      %1302 = vmatpush1.msra.mxu0 0.0
      %1303 = vmatprep.subr.mxu0 0.0
      %1304 = vmatpush1.msra.mxu0 0.0
      %1305 = vmatprep.subr.mxu0 0.0
      %1306 = vmatpush1.msra.mxu0 0.0
      %1307 = vmatprep.subr.mxu0 0.0
      %1308 = vmatpush1.msra.mxu0 0.0
      %1309 = vmatprep.subr.mxu0 0.0
      %1310 = vmatpush1.msra.mxu0 %v1244
      %1311 = vmatprep.subr.mxu0 0.0
      %1312 = vmatpush1.msra.mxu0 %v1243
      %1313 = vmatprep.subr.mxu0 0.0
      %1314 = vmatpush1.msra.mxu0 %v1242
      %1315 = vmatprep.subr.mxu0 0.0
      %1316 = vmatpush1.msra.mxu0 %v1241
      %1317 = vmatprep.subr.mxu0 0.0
      %1318 = vmatpush1.msra.mxu0 %v1240
      %1319 = vmatprep.subr.mxu0 0.0
      %1320 = vmatpush1.msra.mxu0 %v1239
      %1321 = vmatprep.subr.mxu0 0.0
      %1322 = vmatpush1.msra.mxu0 %v1238
      %1323 = vmatprep.subr.mxu0 0.0
      %1324 = vmatpush1.msra.mxu0 %v1237
      %1325 = vmatprep.subr.mxu0 0.0
      %1326 = vmatpush2.msra.mxu0 0.0
      %1327 = vmatprep.subr.mxu0 0.0
      %1328 = vmatpush2.msra.mxu0 0.0
      %1329 = vmatprep.subr.mxu0 0.0
      %1330 = vmatpush2.msra.mxu0 0.0
      %1331 = vmatprep.subr.mxu0 0.0
      %1332 = vmatpush2.msra.mxu0 0.0
      %1333 = vmatprep.subr.mxu0 0.0
      %1334 = vmatpush2.msra.mxu0 0.0
      %1335 = vmatprep.subr.mxu0 0.0
      %1336 = vmatpush2.msra.mxu0 0.0
      %1337 = vmatprep.subr.mxu0 0.0
      %1338 = vmatpush2.msra.mxu0 0.0
      %1339 = vmatprep.subr.mxu0 0.0
      %1340 = vmatpush2.msra.mxu0 0.0
      %1341 = vmatprep.subr.mxu0 0.0
      %1342 = vmatpush2.msra.mxu0 0.0
      %1343 = vmatprep.subr.mxu0 0.0
      %1344 = vmatpush2.msra.mxu0 0.0
      %1345 = vmatprep.subr.mxu0 0.0
      %1346 = vmatpush2.msra.mxu0 0.0
      %1347 = vmatprep.subr.mxu0 0.0
      %1348 = vmatpush2.msra.mxu0 0.0
      %1349 = vmatprep.subr.mxu0 0.0
      %1350 = vmatpush2.msra.mxu0 0.0
      %1351 = vmatprep.subr.mxu0 0.0
      %1352 = vmatpush2.msra.mxu0 0.0
      %1353 = vmatprep.subr.mxu0 0.0
      %1354 = vmatpush2.msra.mxu0 0.0
      %1355 = vmatprep.subr.mxu0 0.0
      %1356 = vmatpush2.msra.mxu0 0.0
      %1357 = vmatprep.mubr.f32.mxu0 0.0
      %1358 = vmatmul.mubr.f32.gmra.mxu0 %v1246
      %v1359 = vpop.f32.mrf.mxu0
      %v1360 = vadd.f32 0.0, %v1359
      %v1361 = vpop.f32.mrf.mxu0
      %1362 = vmatprep.mubr.f32.mxu0 0.0
      %1363 = vmatmul.mubr.f32.gmra.mxu0 %v1249
      %v1364 = vpop.f32.mrf.mxu0
      %v1365 = vadd.f32 0.0, %v1364
      %v1366 = vpop.f32.mrf.mxu0
      %1367 = vmatprep.mubr.f32.mxu0 0.0
      %1368 = vmatmul.mubr.f32.gmra.mxu0 %v1252
      %v1369 = vpop.f32.mrf.mxu0
      %v1370 = vadd.f32 0.0, %v1369
      %v1371 = vpop.f32.mrf.mxu0
      %1372 = vmatprep.mubr.f32.mxu0 0.0
      %1373 = vmatmul.mubr.f32.gmra.mxu0 %v1255
      %v1374 = vpop.f32.mrf.mxu0
      %v1375 = vadd.f32 0.0, %v1374
      %v1376 = vpop.f32.mrf.mxu0
      %1377 = vmatprep.mubr.f32.mxu0 0.0
      %1378 = vmatmul.mubr.f32.gmra.mxu0 %v1258
      %v1379 = vpop.f32.mrf.mxu0
      %v1380 = vadd.f32 0.0, %v1379
      %v1381 = vpop.f32.mrf.mxu0
      %1382 = vmatprep.mubr.f32.mxu0 0.0
      %1383 = vmatmul.mubr.f32.gmra.mxu0 %v1261
      %v1384 = vpop.f32.mrf.mxu0
      %v1385 = vadd.f32 0.0, %v1384
      %v1386 = vpop.f32.mrf.mxu0
      %1387 = vmatprep.mubr.f32.mxu0 0.0
      %1388 = vmatmul.mubr.f32.gmra.mxu0 %v1264
      %v1389 = vpop.f32.mrf.mxu0
      %v1390 = vadd.f32 0.0, %v1389
      %v1391 = vpop.f32.mrf.mxu0
      %1392 = vmatprep.mubr.f32.mxu0 0.0
      %1393 = vmatmul.mubr.f32.gmra.mxu0 %v1267
      %v1394 = vpop.f32.mrf.mxu0
      %v1395 = vadd.f32 0.0, %v1394
      %v1396 = vpop.f32.mrf.mxu0
      %1397 = vmatprep.mubr.f32.mxu0 0.0
      %1398 = vmatmul.mubr.f32.gmra.mxu0 %v1270
      %v1399 = vpop.f32.mrf.mxu0
      %v1400 = vadd.f32 0.0, %v1399
      %v1401 = vpop.f32.mrf.mxu0
      %1402 = vmatprep.mubr.f32.mxu0 0.0
      %1403 = vmatmul.mubr.f32.gmra.mxu0 %v1273
      %v1404 = vpop.f32.mrf.mxu0
      %v1405 = vadd.f32 0.0, %v1404
      %v1406 = vpop.f32.mrf.mxu0
      %1407 = vmatprep.mubr.f32.mxu0 0.0
      %1408 = vmatmul.mubr.f32.gmra.mxu0 %v1276
      %v1409 = vpop.f32.mrf.mxu0
      %v1410 = vadd.f32 0.0, %v1409
      %v1411 = vpop.f32.mrf.mxu0
      %1412 = vmatprep.mubr.f32.mxu0 0.0
      %1413 = vmatmul.mubr.f32.gmra.mxu0 %v1279
      %v1414 = vpop.f32.mrf.mxu0
      %v1415 = vadd.f32 0.0, %v1414
      %v1416 = vpop.f32.mrf.mxu0
      %1417 = vmatprep.mubr.f32.mxu0 0.0
      %1418 = vmatmul.mubr.f32.gmra.mxu0 %v1282
      %v1419 = vpop.f32.mrf.mxu0
      %v1420 = vadd.f32 0.0, %v1419
      %v1421 = vpop.f32.mrf.mxu0
      %1422 = vmatprep.mubr.f32.mxu0 0.0
      %1423 = vmatmul.mubr.f32.gmra.mxu0 %v1285
      %v1424 = vpop.f32.mrf.mxu0
      %v1425 = vadd.f32 0.0, %v1424
      %v1426 = vpop.f32.mrf.mxu0
      %1427 = vmatprep.mubr.f32.mxu0 0.0
      %1428 = vmatmul.mubr.f32.gmra.mxu0 %v1288
      %v1429 = vpop.f32.mrf.mxu0
      %v1430 = vadd.f32 0.0, %v1429
      %v1431 = vpop.f32.mrf.mxu0
      %1432 = vmatprep.mubr.f32.mxu0 0.0
      %1433 = vmatmul.mubr.f32.gmra.mxu0 %v1291
      %v1434 = vpop.f32.mrf.mxu0
      %v1435 = vadd.f32 0.0, %v1434
      %v1436 = vpop.f32.mrf.mxu0
      %1437 = vdwg.mxu0
      %v1438 = vadd.f32 %v887, %v1360
      %v1439 = vadd.f32 %v892, %v1365
      %v1440 = vadd.f32 %v897, %v1370
      %v1441 = vadd.f32 %v902, %v1375
      %v1442 = vadd.f32 %v907, %v1380
      %v1443 = vadd.f32 %v912, %v1385
      %v1444 = vadd.f32 %v917, %v1390
      %v1445 = vadd.f32 %v922, %v1395
      %v1446 = vadd.f32 %v927, %v1400
      %v1447 = vadd.f32 %v932, %v1405
      %v1448 = vadd.f32 %v937, %v1410
      %v1449 = vadd.f32 %v942, %v1415
      %v1450 = vadd.f32 %v947, %v1420
      %v1451 = vadd.f32 %v952, %v1425
      %v1452 = vadd.f32 %v957, %v1430
      %v1453 = vadd.f32 %v962, %v1435
      %v1454 = vld [vmem:[%s444] sm:$0xff]
      %v1456 = vcombine.high %v1454, %v1454
      %v1458 = vunpack.c.l.s4 1966171168
      %v1459 = vunpack.c.0.s8 %v1458
      %v1460 = vlaneseq
      %v1461 = vshrl.u32 %v1460, 7
      %v1462 = vsub.s32 %v1459, %v1461
      %v1463 = vrot.slane %v1454, %v1462
      %v1465 = vunpack.c.l.s4 1966171168
      %v1466 = vunpack.c.0.s8 %v1465
      %v1467 = vlaneseq
      %v1468 = vshrl.u32 %v1467, 7
      %v1469 = vsub.s32 %v1466, %v1468
      %v1470 = vrot.slane %v1456, %v1469
      %v1471 = vcombine.high %v1463, %v1463
      %v1472 = vcombine.high %v1470, %v1470
      %v1474 = vunpack.c.l.s4 1966171168
      %v1475 = vunpack.c.0.s8 %v1474
      %v1476 = vlaneseq
      %v1477 = vshrl.u32 %v1476, 7
      %v1478 = vsub.s32 %v1475, %v1477
      %v1479 = vrot.slane %v1463, %v1478
      %v1481 = vunpack.c.l.s4 1966171168
      %v1482 = vunpack.c.0.s8 %v1481
      %v1483 = vlaneseq
      %v1484 = vshrl.u32 %v1483, 7
      %v1485 = vsub.s32 %v1482, %v1484
      %v1486 = vrot.slane %v1470, %v1485
      %v1488 = vunpack.c.l.s4 1966171168
      %v1489 = vunpack.c.0.s8 %v1488
      %v1490 = vlaneseq
      %v1491 = vshrl.u32 %v1490, 7
      %v1492 = vsub.s32 %v1489, %v1491
      %v1493 = vrot.slane %v1471, %v1492
      %v1495 = vunpack.c.l.s4 1966171168
      %v1496 = vunpack.c.0.s8 %v1495
      %v1497 = vlaneseq
      %v1498 = vshrl.u32 %v1497, 7
      %v1499 = vsub.s32 %v1496, %v1498
      %v1500 = vrot.slane %v1472, %v1499
      %v1501 = vcombine.high %v1479, %v1479
      %v1502 = vcombine.high %v1486, %v1486
      %v1503 = vcombine.high %v1493, %v1493
      %v1504 = vcombine.high %v1500, %v1500
      %v1505 = vld [vmem:[%s4] sm:$0xff]
      %v1506 = vld [vmem:[%s4 + $0x8] sm:$0xff]
      %v1507 = vlaneseq
      %v1508 = vshrl.u32 %v1507, 7
      %v1509 = vsub.s32 0, %v1508
      %v1510 = vrot.slane %v1479, %v1509
      %v1511 = vlaneseq
      %v1512 = vshrl.u32 %v1511, 7
      %v1513 = vsub.s32 0, %v1512
      %v1514 = vrot.slane %v1493, %v1513
      %v1515 = vlaneseq
      %v1516 = vshrl.u32 %v1515, 7
      %v1517 = vsub.s32 0, %v1516
      %v1518 = vrot.slane %v1501, %v1517
      %v1519 = vlaneseq
      %v1520 = vshrl.u32 %v1519, 7
      %v1521 = vsub.s32 0, %v1520
      %v1522 = vrot.slane %v1503, %v1521
      %v1523 = vlaneseq
      %v1524 = vshrl.u32 %v1523, 7
      %v1525 = vsub.s32 0, %v1524
      %v1526 = vrot.slane %v1486, %v1525
      %v1527 = vlaneseq
      %v1528 = vshrl.u32 %v1527, 7
      %v1529 = vsub.s32 0, %v1528
      %v1530 = vrot.slane %v1500, %v1529
      %v1531 = vlaneseq
      %v1532 = vshrl.u32 %v1531, 7
      %v1533 = vsub.s32 0, %v1532
      %v1534 = vrot.slane %v1502, %v1533
      %v1535 = vlaneseq
      %v1536 = vshrl.u32 %v1535, 7
      %v1537 = vsub.s32 0, %v1536
      %v1538 = vrot.slane %v1504, %v1537
      %v1547 = vadd.f32 %v1510, %v1505
      %v1548 = vadd.f32 %v1510, %v1506
      %v1549 = vadd.f32 %v1514, %v1505
      %v1550 = vadd.f32 %v1514, %v1506
      %v1551 = vadd.f32 %v1518, %v1505
      %v1552 = vadd.f32 %v1518, %v1506
      %v1553 = vadd.f32 %v1522, %v1505
      %v1554 = vadd.f32 %v1522, %v1506
      %v1555 = vadd.f32 %v1526, %v1505
      %v1556 = vadd.f32 %v1526, %v1506
      %v1557 = vadd.f32 %v1530, %v1505
      %v1558 = vadd.f32 %v1530, %v1506
      %v1559 = vadd.f32 %v1534, %v1505
      %v1560 = vadd.f32 %v1534, %v1506
      %v1561 = vadd.f32 %v1538, %v1505
      %v1562 = vadd.f32 %v1538, %v1506
      %v1563 = vadd.f32 %v1438, %v1547
      %v1564 = vadd.f32 %v1439, %v1548
      %v1565 = vadd.f32 %v1440, %v1549
      %v1566 = vadd.f32 %v1441, %v1550
      %v1567 = vadd.f32 %v1442, %v1551
      %v1568 = vadd.f32 %v1443, %v1552
      %v1569 = vadd.f32 %v1444, %v1553
      %v1570 = vadd.f32 %v1445, %v1554
      %v1571 = vadd.f32 %v1446, %v1555
      %v1572 = vadd.f32 %v1447, %v1556
      %v1573 = vadd.f32 %v1448, %v1557
      %v1574 = vadd.f32 %v1449, %v1558
      %v1575 = vadd.f32 %v1450, %v1559
      %v1576 = vadd.f32 %v1451, %v1560
      %v1577 = vadd.f32 %v1452, %v1561
      %v1578 = vadd.f32 %v1453, %v1562
      %v1579 = vld [vmem:[%s10] sm:$0x1]
      %v1581 = vlaneseq
      %v1582 = vshrl.u32 %v1581, 7
      %v1583 = vsub.s32 0, %v1582
      %v1584 = vrot.slane %v1579, %v1583
      %v1586 = vadd.f32 %v1563, %v1584
      %v1587 = vadd.f32 %v1564, %v1584
      %v1588 = vadd.f32 %v1565, %v1584
      %v1589 = vadd.f32 %v1566, %v1584
      %v1590 = vadd.f32 %v1567, %v1584
      %v1591 = vadd.f32 %v1568, %v1584
      %v1592 = vadd.f32 %v1569, %v1584
      %v1593 = vadd.f32 %v1570, %v1584
      %v1594 = vadd.f32 %v1571, %v1584
      %v1595 = vadd.f32 %v1572, %v1584
      %v1596 = vadd.f32 %v1573, %v1584
      %v1597 = vadd.f32 %v1574, %v1584
      %v1598 = vadd.f32 %v1575, %v1584
      %v1599 = vadd.f32 %v1576, %v1584
      %v1600 = vadd.f32 %v1577, %v1584
      %v1601 = vadd.f32 %v1578, %v1584
      %1602 = vst.msk [vmem:[%s449] sm:$0xff] %vm981, %v1586
      %1603 = vst.msk [vmem:[%s449 + $0x8] sm:$0xff] %vm981, %v1587
      %1604 = vst.msk [vmem:[%s449 + $0x10] sm:$0xff] %vm981, %v1588
      %1605 = vst.msk [vmem:[%s449 + $0x18] sm:$0xff] %vm981, %v1589
      %1606 = vst.msk [vmem:[%s449 + $0x20] sm:$0xff] %vm981, %v1590
      %1607 = vst.msk [vmem:[%s449 + $0x28] sm:$0xff] %vm981, %v1591
      %1608 = vst.msk [vmem:[%s449 + $0x30] sm:$0xff] %vm981, %v1592
      %1609 = vst.msk [vmem:[%s449 + $0x38] sm:$0xff] %vm981, %v1593
      %1610 = vst.msk [vmem:[%s449 + $0x40] sm:$0xff] %vm981, %v1594
      %1611 = vst.msk [vmem:[%s449 + $0x48] sm:$0xff] %vm981, %v1595
      %1612 = vst.msk [vmem:[%s449 + $0x50] sm:$0xff] %vm981, %v1596
      %1613 = vst.msk [vmem:[%s449 + $0x58] sm:$0xff] %vm981, %v1597
      %1614 = vst.msk [vmem:[%s449 + $0x60] sm:$0xff] %vm981, %v1598
      %1615 = vst.msk [vmem:[%s449 + $0x68] sm:$0xff] %vm981, %v1599
      %1616 = vst.msk [vmem:[%s449 + $0x70] sm:$0xff] %vm981, %v1600
      %1617 = vst.msk [vmem:[%s449 + $0x78] sm:$0xff] %vm981, %v1601
      %s1618 = smul.u32 16, %s22
      %p1619 = scmp.lt.s32.totalorder %s1618, 31
      %s1620 = scalar_select %p1619, %s1618, 31
      %s1621 = smul.addr %s1620, 8
      %s1622 = scalar_lea.vmem %s11, %s1621
      // Predicated region
      $region65: #{tpu_custom_call.1} parent=63 // pred_check
        %p1623 = pneg %p291
      $region66: #{tpu_custom_call.1} parent=63 // pred_check_branch
        %1625 = sbr.rel (%p1623) target = $region68
      $region67: #{tpu_custom_call.1} parent=63 // pred_region
        %s1626 = smul.u32 16, %s22
      $region68: #{tpu_custom_call.1} parent=63 // pred_fallthru
        _
    $region64: #{tpu_custom_call.1} parent=5 // pred_fallthru
      _
    %p1627 = scmp.le.s32.totalorder 2, %s17
    // Predicated region
    $region69: #{tpu_custom_call.1} parent=5 // pred_check
      %p1628 = pneg %p1627
    $region70: #{tpu_custom_call.1} parent=5 // pred_check_branch
      %1630 = sbr.rel (%p1628) target = $region72
    $region71: #{tpu_custom_call.1} parent=5 // pred_region
      %s1631 = ssub.s32 %s17, 2
      // Predicated region
      $region73: #{tpu_custom_call.1} parent=71 // pred_check
        %p1632 = pneg %p297
      $region74: #{tpu_custom_call.1} parent=71 // pred_check_branch
        %1634 = sbr.rel (%p1632) target = $region76
      $region75: #{tpu_custom_call.1} parent=71 // pred_region
        %s1635 = smul.u32 16, %s23
        %p1636 = scmp.lt.s32.totalorder %s1635, 31
        %s1637 = scalar_select %p1636, %s1635, 31
        %s1638 = smul.addr %s1637, 8
        %s1639 = scalar_lea.vmem %s11, %s1638
      $region76: #{tpu_custom_call.1} parent=71 // pred_fallthru
        _
    $region72: #{tpu_custom_call.1} parent=5 // pred_fallthru
      _
  $region6: #{tpu_custom_call.1} parent=0 // loop_footer
    %s21 = sadd.s32 1, %s17
  $region7: #{tpu_custom_call.1} parent=0 // loop_footer_branch
    %16 = sbr.rel target = $region3
  $region8: #{tpu_custom_call.1} parent=0 // loop_exit
    _

</llo_original>
